<compile_context>
chip_gen: v6e
topology: v6e:2x2x1
jax: 0.10.0
libtpu: 0.0.40
codegen_flags: <defaults>
</compile_context>

<pallas_src>
import math

import jax
import jax.numpy as jnp
from jax.experimental import pallas as pl
from jax.experimental.pallas import tpu as pltpu


# --------------------------- tiling helpers --------------------------------

def _pick_tile(n, preferred):
    """Largest preferred tile that divides n, else the full extent (legal block)."""
    for t in preferred:
        if n % t == 0:
            return t
    return n


_VMEM_LIMIT = 48 * 1024 * 1024  # leave headroom vs. v7x's 64 MiB physical VMEM


# ----------------------------- Pallas kernels ------------------------------

def _gate_kernel(x_ref, w1_ref, w3_ref, o_ref, acc1_ref, acc3_ref):
    """o = silu(x @ w1t) * (x @ w3t), accumulated over the k (reduction) grid axis."""
    @pl.when(pl.program_id(2) == 0)
    def _():
        acc1_ref[...] = jnp.zeros_like(acc1_ref)
        acc3_ref[...] = jnp.zeros_like(acc3_ref)

    x = x_ref[...]
    acc1_ref[...] += jnp.dot(x, w1_ref[...], preferred_element_type=jnp.float32)
    acc3_ref[...] += jnp.dot(x, w3_ref[...], preferred_element_type=jnp.float32)

    @pl.when(pl.program_id(2) == pl.num_programs(2) - 1)
    def _():
        a = acc1_ref[...]
        gated = (a * jax.lax.logistic(a)) * acc3_ref[...]   # SiLU(a) * b
        o_ref[...] = gated.astype(o_ref.dtype)


def _matmul_kernel(x_ref, w_ref, o_ref, acc_ref):
    """o = x @ w, accumulated over the k (reduction) grid axis."""
    @pl.when(pl.program_id(2) == 0)
    def _():
        acc_ref[...] = jnp.zeros_like(acc_ref)

    acc_ref[...] += jnp.dot(x_ref[...], w_ref[...],
                            preferred_element_type=jnp.float32)

    @pl.when(pl.program_id(2) == pl.num_programs(2) - 1)
    def _():
        o_ref[...] = acc_ref[...].astype(o_ref.dtype)


# ------------------------------ wrappers ------------------------------------

def gated_matmul(x, w1_t, w3_t):
    """x: (M, K); w1_t, w3_t: (K, N). Returns silu(x@w1_t) * (x@w3_t), shape (M, N)."""
    M, K = x.shape
    N = w1_t.shape[1]
    tm = _pick_tile(M, (256, 128))
    tn = _pick_tile(N, (512, 256, 128))
    tk = _pick_tile(K, (512, 256, 128))
    grid = (M // tm, N // tn, K // tk)
    return pl.pallas_call(
        _gate_kernel,
        out_shape=jax.ShapeDtypeStruct((M, N), x.dtype),
        grid_spec=pltpu.PrefetchScalarGridSpec(
            num_scalar_prefetch=0,
            grid=grid,
            in_specs=[
                pl.BlockSpec((tm, tk), lambda i, j, k: (i, k)),
                pl.BlockSpec((tk, tn), lambda i, j, k: (k, j)),
                pl.BlockSpec((tk, tn), lambda i, j, k: (k, j)),
            ],
            out_specs=pl.BlockSpec((tm, tn), lambda i, j, k: (i, j)),
            scratch_shapes=[
                pltpu.VMEM((tm, tn), jnp.float32),
                pltpu.VMEM((tm, tn), jnp.float32),
            ],
        ),
        compiler_params=pltpu.CompilerParams(
            dimension_semantics=("parallel", "parallel", "arbitrary"),
            vmem_limit_bytes=_VMEM_LIMIT,
        ),
    )(x, w1_t, w3_t)


def linear(x, w_t):
    """x: (M, K) @ w_t: (K, N) -> (M, N). Tiled with f32 accumulator."""
    M, K = x.shape
    N = w_t.shape[1]
    tm = _pick_tile(M, (256, 128))
    tn = _pick_tile(N, (512, 256, 128))
    tk = _pick_tile(K, (512, 256, 128))
    grid = (M // tm, N // tn, K // tk)
    return pl.pallas_call(
        _matmul_kernel,
        out_shape=jax.ShapeDtypeStruct((M, N), x.dtype),
        grid_spec=pltpu.PrefetchScalarGridSpec(
            num_scalar_prefetch=0,
            grid=grid,
            in_specs=[
                pl.BlockSpec((tm, tk), lambda i, j, k: (i, k)),
                pl.BlockSpec((tk, tn), lambda i, j, k: (k, j)),
            ],
            out_specs=pl.BlockSpec((tm, tn), lambda i, j, k: (i, j)),
            scratch_shapes=[pltpu.VMEM((tm, tn), jnp.float32)],
        ),
        compiler_params=pltpu.CompilerParams(
            dimension_semantics=("parallel", "parallel", "arbitrary"),
            vmem_limit_bytes=_VMEM_LIMIT,
        ),
    )(x, w_t)


def feed_forward(x, w1, w2, w3):
    """SwiGLU FFN forward. x: (B, S, D). w1/w3: (H, D), w2: (D, H) (PyTorch layout)."""
    B, S, D = x.shape
    xf = x.reshape(B * S, D)
    h = gated_matmul(xf, w1.T, w3.T)          # (M, H) = silu(x@w1^T) * (x@w3^T)
    out = linear(h, w2.T)                      # (M, D)
    return out.reshape(B, S, D)


def ffn_hidden_dim(dim, hidden_dim, multiple_of, ffn_dim_multiplier=None):
    """Replicates the hidden-dim computation in the PyTorch __init__."""
    hidden_dim = int(2 * hidden_dim / 3)
    if ffn_dim_multiplier is not None:
        hidden_dim = int(ffn_dim_multiplier * hidden_dim)
    hidden_dim = multiple_of * ((hidden_dim + multiple_of - 1) // multiple_of)
    return hidden_dim


# ------------------------------- main --------------------------------------

if __name__ == "__main__":
    # Small but tile-friendly shapes (multiples of 128 so the grid is non-trivial).
    dim = 256
    hidden_dim_arg = 4 * dim            # 1024
    multiple_of = 256
    ffn_dim_multiplier = None
    hidden = ffn_hidden_dim(dim, hidden_dim_arg, multiple_of, ffn_dim_multiplier)  # 768

    batch, seqlen = 2, 128

    key = jax.random.PRNGKey(0)
    kx, k1, k2, k3 = jax.random.split(key, 4)

    x = jax.random.normal(kx, (batch, seqlen, dim), dtype=jnp.float32)

    def init_w(k, out_f, in_f):
        bound = 1.0 / math.sqrt(in_f)
        return jax.random.uniform(k, (out_f, in_f), jnp.float32, -bound, bound)

    w1 = init_w(k1, hidden, dim)        # nn.Linear(dim, hidden).weight
    w2 = init_w(k2, dim, hidden)        # nn.Linear(hidden, dim).weight
    w3 = init_w(k3, hidden, dim)        # nn.Linear(dim, hidden).weight

    out = feed_forward(x, w1, w2, w3)
    out = jax.block_until_ready(out)
    assert out.shape == (batch, seqlen, dim)

    # Pure-JAX reference (same math as the PyTorch forward).
    xf = x.reshape(-1, dim)
    ref = (jax.nn.silu(xf @ w1.T) * (xf @ w3.T)) @ w2.T
    ref = ref.reshape(batch, seqlen, dim)
    assert jnp.allclose(out, ref, rtol=2e-4, atol=2e-4), float(jnp.max(jnp.abs(out - ref)))

    print("KERNEL_OK")
</pallas_src>

<mosaic_0001>
module attributes {stable_mosaic.version = 11 : i64} {
  func.func @_gate_kernel(%arg0: i32, %arg1: i32, %arg2: i32, %arg3: memref<256x256xf32, #tpu.memory_space<vmem>>, %arg4: memref<256x256xf32, #tpu.memory_space<vmem>>, %arg5: memref<256x256xf32, #tpu.memory_space<vmem>>, %arg6: memref<256x256xf32, #tpu.memory_space<vmem>>, %arg7: memref<256x256xf32, #tpu.memory_space<vmem>>, %arg8: memref<256x256xf32, #tpu.memory_space<vmem>>) attributes {dimension_semantics = [#tpu.dimension_semantics<parallel>, #tpu.dimension_semantics<parallel>, #tpu.dimension_semantics<arbitrary>], iteration_bounds = array<i64: 1, 3, 1>, scalar_prefetch = 0 : i64, scratch_operands = 2 : i64, tpu.core_type = #tpu.core_type<tc>, window_params = [{transform_indices = @transform_0, window_bounds = array<i64: 256, 256>}, {transform_indices = @transform_1, window_bounds = array<i64: 256, 256>}, {transform_indices = @transform_2, window_bounds = array<i64: 256, 256>}, {transform_indices = @transform_3, window_bounds = array<i64: 256, 256>}]} {
    %c0_i32 = arith.constant 0 : i32
    %0 = arith.cmpi eq, %arg2, %c0_i32 : i32
    %1 = arith.extui %0 : i1 to i32
    %c0_i32_0 = arith.constant 0 : i32
    %2 = arith.cmpi ne, %1, %c0_i32_0 : i32
    scf.if %2 {
      %cst_17 = arith.constant 0.000000e+00 : f32
      %17 = vector.broadcast %cst_17 : f32 to vector<256x256xf32>
      %c0_18 = arith.constant 0 : index
      %c0_19 = arith.constant 0 : index
      %18 = vector.load %arg7[%c0_18, %c0_19] : memref<256x256xf32, #tpu.memory_space<vmem>>, vector<256x256xf32>
      tpu.vector_store %arg7[%c0_18, %c0_19], %17 {strides = array<i32>} : memref<256x256xf32, #tpu.memory_space<vmem>>, vector<256x256xf32>,
      %cst_20 = arith.constant 0.000000e+00 : f32
      %19 = vector.broadcast %cst_20 : f32 to vector<256x256xf32>
      %c0_21 = arith.constant 0 : index
      %c0_22 = arith.constant 0 : index
      %20 = vector.load %arg8[%c0_21, %c0_22] : memref<256x256xf32, #tpu.memory_space<vmem>>, vector<256x256xf32>
      tpu.vector_store %arg8[%c0_21, %c0_22], %19 {strides = array<i32>} : memref<256x256xf32, #tpu.memory_space<vmem>>, vector<256x256xf32>,
    } else {
    }
    %c0 = arith.constant 0 : index
    %c0_1 = arith.constant 0 : index
    %3 = vector.load %arg3[%c0, %c0_1] : memref<256x256xf32, #tpu.memory_space<vmem>>, vector<256x256xf32>
    %c0_2 = arith.constant 0 : index
    %c0_3 = arith.constant 0 : index
    %4 = vector.load %arg7[%c0_2, %c0_3] : memref<256x256xf32, #tpu.memory_space<vmem>>, vector<256x256xf32>
    %c0_4 = arith.constant 0 : index
    %c0_5 = arith.constant 0 : index
    %5 = vector.load %arg4[%c0_4, %c0_5] : memref<256x256xf32, #tpu.memory_space<vmem>>, vector<256x256xf32>
    %cst = arith.constant dense<0.000000e+00> : vector<256x256xf32>
    %6 = tpu.matmul %3, %5, %cst {dimension_numbers = #tpu.dot_dimension_numbers<[1], [0], [0], [1], [0, 0, 1, 1], [], []>} : vector<256x256xf32>, vector<256x256xf32>, vector<256x256xf32> -> vector<256x256xf32>
    %7 = arith.addf %4, %6 : vector<256x256xf32>
    %c0_6 = arith.constant 0 : index
    %c0_7 = arith.constant 0 : index
    %8 = vector.load %arg7[%c0_6, %c0_7] : memref<256x256xf32, #tpu.memory_space<vmem>>, vector<256x256xf32>
    tpu.vector_store %arg7[%c0_6, %c0_7], %7 {strides = array<i32>} : memref<256x256xf32, #tpu.memory_space<vmem>>, vector<256x256xf32>,
    %c0_8 = arith.constant 0 : index
    %c0_9 = arith.constant 0 : index
    %9 = vector.load %arg8[%c0_8, %c0_9] : memref<256x256xf32, #tpu.memory_space<vmem>>, vector<256x256xf32>
    %c0_10 = arith.constant 0 : index
    %c0_11 = arith.constant 0 : index
    %10 = vector.load %arg5[%c0_10, %c0_11] : memref<256x256xf32, #tpu.memory_space<vmem>>, vector<256x256xf32>
    %cst_12 = arith.constant dense<0.000000e+00> : vector<256x256xf32>
    %11 = tpu.matmul %3, %10, %cst_12 {dimension_numbers = #tpu.dot_dimension_numbers<[1], [0], [0], [1], [0, 0, 1, 1], [], []>} : vector<256x256xf32>, vector<256x256xf32>, vector<256x256xf32> -> vector<256x256xf32>
    %12 = arith.addf %9, %11 : vector<256x256xf32>
    %c0_13 = arith.constant 0 : index
    %c0_14 = arith.constant 0 : index
    %13 = vector.load %arg8[%c0_13, %c0_14] : memref<256x256xf32, #tpu.memory_space<vmem>>, vector<256x256xf32>
    tpu.vector_store %arg8[%c0_13, %c0_14], %12 {strides = array<i32>} : memref<256x256xf32, #tpu.memory_space<vmem>>, vector<256x256xf32>,
    %c0_i32_15 = arith.constant 0 : i32
    %14 = arith.cmpi eq, %arg2, %c0_i32_15 : i32
    %15 = arith.extui %14 : i1 to i32
    %c0_i32_16 = arith.constant 0 : i32
    %16 = arith.cmpi ne, %15, %c0_i32_16 : i32
    scf.if %16 {
      %c0_17 = arith.constant 0 : index
      %c0_18 = arith.constant 0 : index
      %17 = vector.load %arg7[%c0_17, %c0_18] : memref<256x256xf32, #tpu.memory_space<vmem>>, vector<256x256xf32>
      %18 = arith.negf %17 : vector<256x256xf32>
      %19 = math.exp %18 : vector<256x256xf32>
      %cst_19 = arith.constant 1.000000e+00 : f32
      %20 = vector.broadcast %cst_19 : f32 to vector<256x256xf32>
      %21 = arith.addf %20, %19 : vector<256x256xf32>
      %22 = arith.divf %20, %21 : vector<256x256xf32>
      %23 = arith.mulf %17, %22 : vector<256x256xf32>
      %c0_20 = arith.constant 0 : index
      %c0_21 = arith.constant 0 : index
      %24 = vector.load %arg8[%c0_20, %c0_21] : memref<256x256xf32, #tpu.memory_space<vmem>>, vector<256x256xf32>
      %25 = arith.mulf %23, %24 : vector<256x256xf32>
      %c0_22 = arith.constant 0 : index
      %c0_23 = arith.constant 0 : index
      %26 = vector.load %arg6[%c0_22, %c0_23] : memref<256x256xf32, #tpu.memory_space<vmem>>, vector<256x256xf32>
      tpu.vector_store %arg6[%c0_22, %c0_23], %25 {strides = array<i32>} : memref<256x256xf32, #tpu.memory_space<vmem>>, vector<256x256xf32>,
    } else {
    }
    return
  }
  func.func @transform_0(%arg0: i32, %arg1: i32, %arg2: i32) -> (i32, i32) {
    %c0_i32 = arith.constant 0 : i32
    return %arg0, %arg2 : i32, i32
  }
  func.func @transform_1(%arg0: i32, %arg1: i32, %arg2: i32) -> (i32, i32) {
    %c0_i32 = arith.constant 0 : i32
    return %arg2, %arg1 : i32, i32
  }
  func.func @transform_2(%arg0: i32, %arg1: i32, %arg2: i32) -> (i32, i32) {
    %c0_i32 = arith.constant 0 : i32
    return %arg2, %arg1 : i32, i32
  }
  func.func @transform_3(%arg0: i32, %arg1: i32, %arg2: i32) -> (i32, i32) {
    %c0_i32 = arith.constant 0 : i32
    return %arg0, %arg1 : i32, i32
  }
}

</mosaic_0001>

<llo_original>
// kernel: tpu_custom_call.1
$region0: #{tpu_custom_call.1}
  #allocation0 [shape = 'u32[]', space=smem, size = 0x4, offset = 0x4, fixed_abs, tag = 'smem constant byte address 0x4 - core index']
  #allocation1 [shape = 'u32[144,128]{1,0:T(1,128)}', space=vmem, size = 0x12000, scoped, tag = 'internal scratch']
  #allocation2 [shape = 'f32[256,256]{1,0:T(8,128)}', space=vmem, size = 0x40000, scoped, tag = 'scratch operand']
  #allocation3 [shape = 'f32[256,256]{1,0:T(8,128)}', space=vmem, size = 0x40000, scoped, tag = 'scratch operand']
  %s0 = inlined_call_operand.hbm [shape: f32[256,256], index: 0, kind: input, shape index: {}]
  %s1 = inlined_call_operand.hbm [shape: f32[256,768], index: 1, kind: input, shape index: {}]
  %s2 = inlined_call_operand.hbm [shape: f32[256,768], index: 2, kind: input, shape index: {}]
  %s3 = inlined_call_operand.hbm [shape: f32[256,768], index: 3, kind: output, shape index: {}]
  %s4 = sld [smem:[#allocation0]]
  $region65: #{tpu_custom_call.1} parent=0
    _
  %s6 = ssub.s32 1, %s4
  %s7 = scalar_select 0, %s6, %s4
  $region1: #{tpu_custom_call.1} parent=0
    #allocation4 [shape = 'u8[262144]{0}', space=vmem, size = 0x40000, scoped, tag = 'input window, operand 0, single buffered']
    #allocation5 [shape = 's32[2]{0}', space=sflag, size = 0x8, scoped, tag = 'scoped memory for tpu_custom_call.1']
    #allocation6 [shape = 's32[2]{0}', space=sflag, size = 0x8, scoped, tag = 'scoped memory for tpu_custom_call.1']
    #allocation7 [shape = 'u8[524288]{0}', space=vmem, size = 0x80000, scoped, tag = 'input window, operand 1']
    #allocation8 [shape = 's32[2]{0}', space=sflag, size = 0x8, scoped, tag = 'scoped memory for tpu_custom_call.1']
    #allocation9 [shape = 'u8[524288]{0}', space=vmem, size = 0x80000, scoped, tag = 'input window, operand 2']
    #allocation10 [shape = 'u8[524288]{0}', space=vmem, size = 0x80000, scoped, tag = 'output window, operand 0']
    %8 = vsyncpa [#allocation5], 0
    %9 = vsyncpa [#allocation8], 0
    %s10 = scalar_lea.sflag [#allocation8], 1
    %11 = vsyncpa %s10, 0
    %12 = vsyncpa [#allocation6], 0
    %s13 = scalar_lea.sflag [#allocation6], 1
    %14 = vsyncpa %s13, 0
    loop: start=0, step=1, limit=5
    $region2: #{tpu_custom_call.1} parent=1 // loop_pre_header
      _
    $region3: #{tpu_custom_call.1} parent=1 // loop_header
      %s16 = sphi 0, %s20
      %p17 = scmp.ge.s32.totalorder %s16, 5
      %s23 = sphi 0, %s42
      %s24 = sphi 0, %s38
      %s25 = sphi 0, %s34
      %s26 = sphi 0, %s23
      %s27 = sphi 0, %s24
      %s28 = sphi 0, %s25
      %s29 = sphi 0, %s26
      %s30 = sphi 0, %s27
      %s31 = sphi 0, %s28
      %s47 = sphi 0, %s49
      %s50 = sphi 0, %s47
      %s51 = sphi 0, %s50
      %s67 = sphi 0, %s51
      %s75 = sphi 0, %s77
      %s78 = sphi 0, %s75
      %s79 = sphi 0, %s78
      %s95 = sphi 0, %s79
      %s103 = sphi 0, %s105
      %s106 = sphi 0, %s103
      %s107 = sphi 0, %s106
      %s123 = sphi 0, %s107
      %s131 = sphi 0, %s133
      %s134 = sphi 0, %s131
      %s135 = sphi 0, %s134
      %s151 = sphi 0, %s135
    $region4: #{tpu_custom_call.1} parent=1 // loop_header_branch
      %19 = sbr.rel (%p17) target = $region8
    $region5: #{tpu_custom_call.1} parent=1 // loop_body
      %s21 = ssub.s32 %s16, 1
      %s22 = ssub.s32 %s16, 2
      %s32 = sadd.s32 1, %s25
      %p33 = scmp.ge.s32.totalorder %s32, 1
      %s34 = scalar_select %p33, 0, %s32
      %s35 = sadd.s32 1, %s24
      %s36 = scalar_select %p33, %s35, %s24
      %p37 = scmp.ge.s32.totalorder %s36, 3
      %s38 = scalar_select %p37, 0, %s36
      %s39 = sadd.s32 1, %s23
      %s40 = scalar_select %p37, %s39, %s23
      %p41 = scmp.ge.s32.totalorder %s40, 1
      %s42 = scalar_select %p41, 0, %s40
      %s43 = ssub.s32 %s23, %s42
      %s44 = ssub.s32 %s25, %s34
      %s45 = sor.u32 %s43, %s44
      %p46 = scmp.eq.s32.totalorder %s45, 0
      %s48 = sadd.s32 %s47, 1
      %s49 = scalar_select %p46, %s47, %s48
      %p52 = pneg %p46
      %p53 = scmp.eq.s32.totalorder %s16, 2
      %p54 = por %p52, %p53
      %p55 = scmp.ne.s32.totalorder %s47, %s50
      %p56 = scmp.eq.s32.totalorder %s16, 0
      %p57 = por %p55, %p56
      %p58 = scmp.ne.s32.totalorder %s47, %s50
      %p59 = scmp.eq.s32.totalorder %s21, 2
      %p60 = por %p58, %p59
      %p61 = scmp.ne.s32.totalorder %s50, %s51
      %p62 = scmp.eq.s32.totalorder %s21, 0
      %p63 = por %p61, %p62
      %p64 = scmp.ne.s32.totalorder %s50, %s51
      %p65 = scmp.eq.s32.totalorder %s22, 2
      %p66 = por %p64, %p65
      %p68 = scmp.ne.s32.totalorder %s51, %s67
      %p69 = scmp.eq.s32.totalorder %s22, 0
      %p70 = por %p68, %p69
      %s71 = ssub.s32 %s25, %s34
      %s72 = ssub.s32 %s24, %s38
      %s73 = sor.u32 %s71, %s72
      %p74 = scmp.eq.s32.totalorder %s73, 0
      %s76 = sadd.s32 %s75, 1
      %s77 = scalar_select %p74, %s75, %s76
      %p80 = pneg %p74
      %p81 = scmp.eq.s32.totalorder %s16, 2
      %p82 = por %p80, %p81
      %p83 = scmp.ne.s32.totalorder %s75, %s78
      %p84 = scmp.eq.s32.totalorder %s16, 0
      %p85 = por %p83, %p84
      %p86 = scmp.ne.s32.totalorder %s75, %s78
      %p87 = scmp.eq.s32.totalorder %s21, 2
      %p88 = por %p86, %p87
      %p89 = scmp.ne.s32.totalorder %s78, %s79
      %p90 = scmp.eq.s32.totalorder %s21, 0
      %p91 = por %p89, %p90
      %p92 = scmp.ne.s32.totalorder %s78, %s79
      %p93 = scmp.eq.s32.totalorder %s22, 2
      %p94 = por %p92, %p93
      %p96 = scmp.ne.s32.totalorder %s79, %s95
      %p97 = scmp.eq.s32.totalorder %s22, 0
      %p98 = por %p96, %p97
      %s99 = ssub.s32 %s25, %s34
      %s100 = ssub.s32 %s24, %s38
      %s101 = sor.u32 %s99, %s100
      %p102 = scmp.eq.s32.totalorder %s101, 0
      %s104 = sadd.s32 %s103, 1
      %s105 = scalar_select %p102, %s103, %s104
      %p108 = pneg %p102
      %p109 = scmp.eq.s32.totalorder %s16, 2
      %p110 = por %p108, %p109
      %p111 = scmp.ne.s32.totalorder %s103, %s106
      %p112 = scmp.eq.s32.totalorder %s16, 0
      %p113 = por %p111, %p112
      %p114 = scmp.ne.s32.totalorder %s103, %s106
      %p115 = scmp.eq.s32.totalorder %s21, 2
      %p116 = por %p114, %p115
      %p117 = scmp.ne.s32.totalorder %s106, %s107
      %p118 = scmp.eq.s32.totalorder %s21, 0
      %p119 = por %p117, %p118
      %p120 = scmp.ne.s32.totalorder %s106, %s107
      %p121 = scmp.eq.s32.totalorder %s22, 2
      %p122 = por %p120, %p121
      %p124 = scmp.ne.s32.totalorder %s107, %s123
      %p125 = scmp.eq.s32.totalorder %s22, 0
      %p126 = por %p124, %p125
      %s127 = ssub.s32 %s23, %s42
      %s128 = ssub.s32 %s24, %s38
      %s129 = sor.u32 %s127, %s128
      %p130 = scmp.eq.s32.totalorder %s129, 0
      %s132 = sadd.s32 %s131, 1
      %s133 = scalar_select %p130, %s131, %s132
      %p136 = pneg %p130
      %p137 = scmp.eq.s32.totalorder %s16, 2
      %p138 = por %p136, %p137
      %p139 = scmp.ne.s32.totalorder %s131, %s134
      %p140 = scmp.eq.s32.totalorder %s16, 0
      %p141 = por %p139, %p140
      %p142 = scmp.ne.s32.totalorder %s131, %s134
      %p143 = scmp.eq.s32.totalorder %s21, 2
      %p144 = por %p142, %p143
      %p145 = scmp.ne.s32.totalorder %s134, %s135
      %p146 = scmp.eq.s32.totalorder %s21, 0
      %p147 = por %p145, %p146
      %p148 = scmp.ne.s32.totalorder %s134, %s135
      %p149 = scmp.eq.s32.totalorder %s22, 2
      %p150 = por %p148, %p149
      %p152 = scmp.ne.s32.totalorder %s135, %s151
      %p153 = scmp.eq.s32.totalorder %s22, 0
      %p154 = por %p152, %p153
      %p155 = scmp.le.s32.totalorder 1, %s16
      %p156 = scmp.lt.s32.totalorder %s16, 4
      %p157 = pnand %p155, %p156
      %p158 = pneg %p157
      // Predicated region
      $region9: #{tpu_custom_call.1} parent=5 // pred_check
        _
      $region10: #{tpu_custom_call.1} parent=5 // pred_check_branch
        %160 = sbr.rel (%p157) target = $region12
      $region11: #{tpu_custom_call.1} parent=5 // pred_region
        %s161 = ssub.s32 %s16, 1
        // Predicated region
        $region13: #{tpu_custom_call.1} parent=11 // pred_check
          %p162 = pneg %p63
        $region14: #{tpu_custom_call.1} parent=11 // pred_check_branch
          %164 = sbr.rel (%p162) target = $region16
        $region15: #{tpu_custom_call.1} parent=11 // pred_region
          %s165 = smul.u32 32, %s26
          %s166 = smul.u32 2, %s28
          %s168 = ssub.s32 8192, 8192
          %169 = vsyncadd [#allocation5], %s168
          %s170 = smul.addr %s165, 2
          %s171 = sadd.s32 %s166, %s170
          %s172 = smul.addr %s171, 128
          %s173 = scalar_lea.hbm %s0, %s172
          %s174 = sshll.u32 [#allocation4], 4
          %s175 = int_to_ptr.vmem [resolvable:$true] %s174
          %180 = dma.hbm_to_vmem [thread:$0]  %s173, 8192, %s175, [#allocation5], 256, 256, 16
        $region16: #{tpu_custom_call.1} parent=11 // pred_fallthru
          _
      $region12: #{tpu_custom_call.1} parent=5 // pred_fallthru
        _
      %p181 = scmp.lt.s32.totalorder %s16, 3
      // Predicated region
      $region17: #{tpu_custom_call.1} parent=5 // pred_check
        %p182 = pneg %p181
      $region18: #{tpu_custom_call.1} parent=5 // pred_check_branch
        %184 = sbr.rel (%p182) target = $region20
      $region19: #{tpu_custom_call.1} parent=5 // pred_region
        // Predicated region
        $region21: #{tpu_custom_call.1} parent=19 // pred_check
          %p185 = pneg %p85
        $region22: #{tpu_custom_call.1} parent=19 // pred_check_branch
          %187 = sbr.rel (%p185) target = $region24
        $region23: #{tpu_custom_call.1} parent=19 // pred_region
          %s188 = sand.u32 %s16, 1
          %s189 = scalar_lea.sflag [#allocation8], %s188
          %s190 = sand.u32 %s75, 1
          %s191 = smul.addr %s190, 512
          %s192 = scalar_lea.vmem [#allocation7], %s191
          %s193 = smul.u32 32, %s25
          %s194 = smul.u32 2, %s24
          %s196 = ssub.s32 8192, 8192
          %197 = vsyncadd %s189, %s196
          %s198 = smul.addr %s193, 6
          %s199 = sadd.s32 %s194, %s198
          %s200 = smul.addr %s199, 128
          %s201 = scalar_lea.hbm %s1, %s200
          %s202 = sshll.u32 %s192, 4
          %s203 = int_to_ptr.vmem [resolvable:$true] %s202
          %208 = dma.hbm_to_vmem [thread:$0]  %s201, 8192, %s203, %s189, 768, 256, 16
        $region24: #{tpu_custom_call.1} parent=19 // pred_fallthru
          _
        // Predicated region
        $region25: #{tpu_custom_call.1} parent=19 // pred_check
          %p209 = pneg %p113
        $region26: #{tpu_custom_call.1} parent=19 // pred_check_branch
          %211 = sbr.rel (%p209) target = $region28
        $region27: #{tpu_custom_call.1} parent=19 // pred_region
          %s212 = sand.u32 %s16, 1
          %s213 = scalar_lea.sflag [#allocation8], %s212
          %s214 = sand.u32 %s103, 1
          %s215 = smul.addr %s214, 512
          %s216 = scalar_lea.vmem [#allocation9], %s215
          %s217 = smul.u32 32, %s25
          %s218 = smul.u32 2, %s24
          %s220 = ssub.s32 8192, 8192
          %221 = vsyncadd %s213, %s220
          %s222 = smul.addr %s217, 6
          %s223 = sadd.s32 %s218, %s222
          %s224 = smul.addr %s223, 128
          %s225 = scalar_lea.hbm %s2, %s224
          %s226 = sshll.u32 %s216, 4
          %s227 = int_to_ptr.vmem [resolvable:$true] %s226
          %232 = dma.hbm_to_vmem [thread:$0]  %s225, 8192, %s227, %s213, 768, 256, 16
        $region28: #{tpu_custom_call.1} parent=19 // pred_fallthru
          _
      $region20: #{tpu_custom_call.1} parent=5 // pred_fallthru
        _
      %p233 = scmp.le.s32.totalorder 1, %s16
      %p234 = scmp.lt.s32.totalorder %s16, 4
      %p235 = pnand %p233, %p234
      %p236 = pneg %p235
      // Predicated region
      $region29: #{tpu_custom_call.1} parent=5 // pred_check
        _
      $region30: #{tpu_custom_call.1} parent=5 // pred_check_branch
        %238 = sbr.rel (%p235) target = $region32
      $region31: #{tpu_custom_call.1} parent=5 // pred_region
        %s239 = ssub.s32 %s16, 1
        // Predicated region
        $region33: #{tpu_custom_call.1} parent=31 // pred_check
          %p240 = pneg %p63
        $region34: #{tpu_custom_call.1} parent=31 // pred_check_branch
          %242 = sbr.rel (%p240) target = $region36
        $region35: #{tpu_custom_call.1} parent=31 // pred_region
          %243 = dma.done [#allocation5], 8192
        $region36: #{tpu_custom_call.1} parent=31 // pred_fallthru
          _
        %s244 = sand.u32 %s21, 1
        %s245 = scalar_lea.sflag [#allocation8], %s244
        %s246 = sand.u32 %s78, 1
        %s247 = smul.addr %s246, 512
        %s248 = scalar_lea.vmem [#allocation7], %s247
        // Predicated region
        $region37: #{tpu_custom_call.1} parent=31 // pred_check
          %p249 = pneg %p91
        $region38: #{tpu_custom_call.1} parent=31 // pred_check_branch
          %251 = sbr.rel (%p249) target = $region40
        $region39: #{tpu_custom_call.1} parent=31 // pred_region
          %252 = dma.done %s245, 8192
        $region40: #{tpu_custom_call.1} parent=31 // pred_fallthru
          _
        %s253 = sand.u32 %s21, 1
        %s254 = scalar_lea.sflag [#allocation8], %s253
        %s255 = sand.u32 %s106, 1
        %s256 = smul.addr %s255, 512
        %s257 = scalar_lea.vmem [#allocation9], %s256
        // Predicated region
        $region41: #{tpu_custom_call.1} parent=31 // pred_check
          %p258 = pneg %p119
        $region42: #{tpu_custom_call.1} parent=31 // pred_check_branch
          %260 = sbr.rel (%p258) target = $region44
        $region43: #{tpu_custom_call.1} parent=31 // pred_region
          %261 = dma.done %s254, 8192
        $region44: #{tpu_custom_call.1} parent=31 // pred_fallthru
          _
        %p262 = pneg %p63
        %p263 = pneg %p60
        %s264 = sand.u32 %s21, 1
        %s265 = scalar_lea.sflag [#allocation8], %s264
        %s266 = sand.u32 %s78, 1
        %s267 = smul.addr %s266, 512
        %s268 = scalar_lea.vmem [#allocation7], %s267
        %p269 = pneg %p91
        %p270 = pneg %p88
        %s271 = sand.u32 %s21, 1
        %s272 = scalar_lea.sflag [#allocation8], %s271
        %s273 = sand.u32 %s106, 1
        %s274 = smul.addr %s273, 512
        %s275 = scalar_lea.vmem [#allocation9], %s274
        %p276 = pneg %p119
        %p277 = pneg %p116
        %p278 = pneg %p147
        %p279 = pneg %p144
        %s280 = sand.u32 %s134, 1
        %s281 = scalar_lea.sflag [#allocation6], %s280
        %s282 = sand.u32 %s134, 1
        %s283 = smul.addr %s282, 512
        %s284 = scalar_lea.vmem [#allocation10], %s283
        %s285 = smul.u32 32, %s26
        %s286 = smul.u32 2, %s28
        %s287 = smul.u32 32, %s28
        %s288 = smul.u32 2, %s27
        %s289 = smul.u32 32, %s28
        %s290 = smul.u32 2, %s27
        %s291 = smul.u32 32, %s26
        %s292 = smul.u32 2, %s27
        %p293 = scmp.eq.s32.totalorder %s28, 0
        // Predicated region
        $region45: #{tpu_custom_call.1} parent=31 // pred_check
          %p294 = pneg %p293
        $region46: #{tpu_custom_call.1} parent=31 // pred_check_branch
          %296 = sbr.rel (%p294) target = $region48
        $region47: #{tpu_custom_call.1} parent=31 // pred_region
          %297 = vst [vmem:[#allocation2] sm:$0xff] 0.0
          %298 = vst [vmem:[#allocation2 + $0x8] sm:$0xff] 0.0
          %299 = vst [vmem:[#allocation2 + $0x10] sm:$0xff] 0.0
          %300 = vst [vmem:[#allocation2 + $0x18] sm:$0xff] 0.0
          %301 = vst [vmem:[#allocation2 + $0x20] sm:$0xff] 0.0
          %302 = vst [vmem:[#allocation2 + $0x28] sm:$0xff] 0.0
          %303 = vst [vmem:[#allocation2 + $0x30] sm:$0xff] 0.0
          %304 = vst [vmem:[#allocation2 + $0x38] sm:$0xff] 0.0
          %305 = vst [vmem:[#allocation2 + $0x40] sm:$0xff] 0.0
          %306 = vst [vmem:[#allocation2 + $0x48] sm:$0xff] 0.0
          %307 = vst [vmem:[#allocation2 + $0x50] sm:$0xff] 0.0
          %308 = vst [vmem:[#allocation2 + $0x58] sm:$0xff] 0.0
          %309 = vst [vmem:[#allocation2 + $0x60] sm:$0xff] 0.0
          %310 = vst [vmem:[#allocation2 + $0x68] sm:$0xff] 0.0
          %311 = vst [vmem:[#allocation2 + $0x70] sm:$0xff] 0.0
          %312 = vst [vmem:[#allocation2 + $0x78] sm:$0xff] 0.0
          %313 = vst [vmem:[#allocation2 + $0x80] sm:$0xff] 0.0
          %314 = vst [vmem:[#allocation2 + $0x88] sm:$0xff] 0.0
          %315 = vst [vmem:[#allocation2 + $0x90] sm:$0xff] 0.0
          %316 = vst [vmem:[#allocation2 + $0x98] sm:$0xff] 0.0
          %317 = vst [vmem:[#allocation2 + $0xa0] sm:$0xff] 0.0
          %318 = vst [vmem:[#allocation2 + $0xa8] sm:$0xff] 0.0
          %319 = vst [vmem:[#allocation2 + $0xb0] sm:$0xff] 0.0
          %320 = vst [vmem:[#allocation2 + $0xb8] sm:$0xff] 0.0
          %321 = vst [vmem:[#allocation2 + $0xc0] sm:$0xff] 0.0
          %322 = vst [vmem:[#allocation2 + $0xc8] sm:$0xff] 0.0
          %323 = vst [vmem:[#allocation2 + $0xd0] sm:$0xff] 0.0
          %324 = vst [vmem:[#allocation2 + $0xd8] sm:$0xff] 0.0
          %325 = vst [vmem:[#allocation2 + $0xe0] sm:$0xff] 0.0
          %326 = vst [vmem:[#allocation2 + $0xe8] sm:$0xff] 0.0
          %327 = vst [vmem:[#allocation2 + $0xf0] sm:$0xff] 0.0
          %328 = vst [vmem:[#allocation2 + $0xf8] sm:$0xff] 0.0
          %329 = vst [vmem:[#allocation2 + $0x100] sm:$0xff] 0.0
          %330 = vst [vmem:[#allocation2 + $0x108] sm:$0xff] 0.0
          %331 = vst [vmem:[#allocation2 + $0x110] sm:$0xff] 0.0
          %332 = vst [vmem:[#allocation2 + $0x118] sm:$0xff] 0.0
          %333 = vst [vmem:[#allocation2 + $0x120] sm:$0xff] 0.0
          %334 = vst [vmem:[#allocation2 + $0x128] sm:$0xff] 0.0
          %335 = vst [vmem:[#allocation2 + $0x130] sm:$0xff] 0.0
          %336 = vst [vmem:[#allocation2 + $0x138] sm:$0xff] 0.0
          %337 = vst [vmem:[#allocation2 + $0x140] sm:$0xff] 0.0
          %338 = vst [vmem:[#allocation2 + $0x148] sm:$0xff] 0.0
          %339 = vst [vmem:[#allocation2 + $0x150] sm:$0xff] 0.0
          %340 = vst [vmem:[#allocation2 + $0x158] sm:$0xff] 0.0
          %341 = vst [vmem:[#allocation2 + $0x160] sm:$0xff] 0.0
          %342 = vst [vmem:[#allocation2 + $0x168] sm:$0xff] 0.0
          %343 = vst [vmem:[#allocation2 + $0x170] sm:$0xff] 0.0
          %344 = vst [vmem:[#allocation2 + $0x178] sm:$0xff] 0.0
          %345 = vst [vmem:[#allocation2 + $0x180] sm:$0xff] 0.0
          %346 = vst [vmem:[#allocation2 + $0x188] sm:$0xff] 0.0
          %347 = vst [vmem:[#allocation2 + $0x190] sm:$0xff] 0.0
          %348 = vst [vmem:[#allocation2 + $0x198] sm:$0xff] 0.0
          %349 = vst [vmem:[#allocation2 + $0x1a0] sm:$0xff] 0.0
          %350 = vst [vmem:[#allocation2 + $0x1a8] sm:$0xff] 0.0
          %351 = vst [vmem:[#allocation2 + $0x1b0] sm:$0xff] 0.0
          %352 = vst [vmem:[#allocation2 + $0x1b8] sm:$0xff] 0.0
          %353 = vst [vmem:[#allocation2 + $0x1c0] sm:$0xff] 0.0
          %354 = vst [vmem:[#allocation2 + $0x1c8] sm:$0xff] 0.0
          %355 = vst [vmem:[#allocation2 + $0x1d0] sm:$0xff] 0.0
          %356 = vst [vmem:[#allocation2 + $0x1d8] sm:$0xff] 0.0
          %357 = vst [vmem:[#allocation2 + $0x1e0] sm:$0xff] 0.0
          %358 = vst [vmem:[#allocation2 + $0x1e8] sm:$0xff] 0.0
          %359 = vst [vmem:[#allocation2 + $0x1f0] sm:$0xff] 0.0
          %360 = vst [vmem:[#allocation2 + $0x1f8] sm:$0xff] 0.0
          %361 = vst [vmem:[#allocation3] sm:$0xff] 0.0
          %362 = vst [vmem:[#allocation3 + $0x8] sm:$0xff] 0.0
          %363 = vst [vmem:[#allocation3 + $0x10] sm:$0xff] 0.0
          %364 = vst [vmem:[#allocation3 + $0x18] sm:$0xff] 0.0
          %365 = vst [vmem:[#allocation3 + $0x20] sm:$0xff] 0.0
          %366 = vst [vmem:[#allocation3 + $0x28] sm:$0xff] 0.0
          %367 = vst [vmem:[#allocation3 + $0x30] sm:$0xff] 0.0
          %368 = vst [vmem:[#allocation3 + $0x38] sm:$0xff] 0.0
          %369 = vst [vmem:[#allocation3 + $0x40] sm:$0xff] 0.0
          %370 = vst [vmem:[#allocation3 + $0x48] sm:$0xff] 0.0
          %371 = vst [vmem:[#allocation3 + $0x50] sm:$0xff] 0.0
          %372 = vst [vmem:[#allocation3 + $0x58] sm:$0xff] 0.0
          %373 = vst [vmem:[#allocation3 + $0x60] sm:$0xff] 0.0
          %374 = vst [vmem:[#allocation3 + $0x68] sm:$0xff] 0.0
          %375 = vst [vmem:[#allocation3 + $0x70] sm:$0xff] 0.0
          %376 = vst [vmem:[#allocation3 + $0x78] sm:$0xff] 0.0
          %377 = vst [vmem:[#allocation3 + $0x80] sm:$0xff] 0.0
          %378 = vst [vmem:[#allocation3 + $0x88] sm:$0xff] 0.0
          %379 = vst [vmem:[#allocation3 + $0x90] sm:$0xff] 0.0
          %380 = vst [vmem:[#allocation3 + $0x98] sm:$0xff] 0.0
          %381 = vst [vmem:[#allocation3 + $0xa0] sm:$0xff] 0.0
          %382 = vst [vmem:[#allocation3 + $0xa8] sm:$0xff] 0.0
          %383 = vst [vmem:[#allocation3 + $0xb0] sm:$0xff] 0.0
          %384 = vst [vmem:[#allocation3 + $0xb8] sm:$0xff] 0.0
          %385 = vst [vmem:[#allocation3 + $0xc0] sm:$0xff] 0.0
          %386 = vst [vmem:[#allocation3 + $0xc8] sm:$0xff] 0.0
          %387 = vst [vmem:[#allocation3 + $0xd0] sm:$0xff] 0.0
          %388 = vst [vmem:[#allocation3 + $0xd8] sm:$0xff] 0.0
          %389 = vst [vmem:[#allocation3 + $0xe0] sm:$0xff] 0.0
          %390 = vst [vmem:[#allocation3 + $0xe8] sm:$0xff] 0.0
          %391 = vst [vmem:[#allocation3 + $0xf0] sm:$0xff] 0.0
          %392 = vst [vmem:[#allocation3 + $0xf8] sm:$0xff] 0.0
          %393 = vst [vmem:[#allocation3 + $0x100] sm:$0xff] 0.0
          %394 = vst [vmem:[#allocation3 + $0x108] sm:$0xff] 0.0
          %395 = vst [vmem:[#allocation3 + $0x110] sm:$0xff] 0.0
          %396 = vst [vmem:[#allocation3 + $0x118] sm:$0xff] 0.0
          %397 = vst [vmem:[#allocation3 + $0x120] sm:$0xff] 0.0
          %398 = vst [vmem:[#allocation3 + $0x128] sm:$0xff] 0.0
          %399 = vst [vmem:[#allocation3 + $0x130] sm:$0xff] 0.0
          %400 = vst [vmem:[#allocation3 + $0x138] sm:$0xff] 0.0
          %401 = vst [vmem:[#allocation3 + $0x140] sm:$0xff] 0.0
          %402 = vst [vmem:[#allocation3 + $0x148] sm:$0xff] 0.0
          %403 = vst [vmem:[#allocation3 + $0x150] sm:$0xff] 0.0
          %404 = vst [vmem:[#allocation3 + $0x158] sm:$0xff] 0.0
          %405 = vst [vmem:[#allocation3 + $0x160] sm:$0xff] 0.0
          %406 = vst [vmem:[#allocation3 + $0x168] sm:$0xff] 0.0
          %407 = vst [vmem:[#allocation3 + $0x170] sm:$0xff] 0.0
          %408 = vst [vmem:[#allocation3 + $0x178] sm:$0xff] 0.0
          %409 = vst [vmem:[#allocation3 + $0x180] sm:$0xff] 0.0
          %410 = vst [vmem:[#allocation3 + $0x188] sm:$0xff] 0.0
          %411 = vst [vmem:[#allocation3 + $0x190] sm:$0xff] 0.0
          %412 = vst [vmem:[#allocation3 + $0x198] sm:$0xff] 0.0
          %413 = vst [vmem:[#allocation3 + $0x1a0] sm:$0xff] 0.0
          %414 = vst [vmem:[#allocation3 + $0x1a8] sm:$0xff] 0.0
          %415 = vst [vmem:[#allocation3 + $0x1b0] sm:$0xff] 0.0
          %416 = vst [vmem:[#allocation3 + $0x1b8] sm:$0xff] 0.0
          %417 = vst [vmem:[#allocation3 + $0x1c0] sm:$0xff] 0.0
          %418 = vst [vmem:[#allocation3 + $0x1c8] sm:$0xff] 0.0
          %419 = vst [vmem:[#allocation3 + $0x1d0] sm:$0xff] 0.0
          %420 = vst [vmem:[#allocation3 + $0x1d8] sm:$0xff] 0.0
          %421 = vst [vmem:[#allocation3 + $0x1e0] sm:$0xff] 0.0
          %422 = vst [vmem:[#allocation3 + $0x1e8] sm:$0xff] 0.0
          %423 = vst [vmem:[#allocation3 + $0x1f0] sm:$0xff] 0.0
          %424 = vst [vmem:[#allocation3 + $0x1f8] sm:$0xff] 0.0
        $region48: #{tpu_custom_call.1} parent=31 // pred_fallthru
          _
        %v425 = vld [vmem:[#allocation4] sm:$0xff]
        %v426 = vld [vmem:[#allocation4 + $0x8] sm:$0xff]
        %v427 = vld [vmem:[#allocation4 + $0x10] sm:$0xff]
        %v428 = vld [vmem:[#allocation4 + $0x18] sm:$0xff]
        %v429 = vld [vmem:[#allocation4 + $0x20] sm:$0xff]
        %v430 = vld [vmem:[#allocation4 + $0x28] sm:$0xff]
        %v431 = vld [vmem:[#allocation4 + $0x30] sm:$0xff]
        %v432 = vld [vmem:[#allocation4 + $0x38] sm:$0xff]
        %v433 = vld [vmem:[#allocation4 + $0x40] sm:$0xff]
        %v434 = vld [vmem:[#allocation4 + $0x48] sm:$0xff]
        %v435 = vld [vmem:[#allocation4 + $0x50] sm:$0xff]
        %v436 = vld [vmem:[#allocation4 + $0x58] sm:$0xff]
        %v437 = vld [vmem:[#allocation4 + $0x60] sm:$0xff]
        %v438 = vld [vmem:[#allocation4 + $0x68] sm:$0xff]
        %v439 = vld [vmem:[#allocation4 + $0x70] sm:$0xff]
        %v440 = vld [vmem:[#allocation4 + $0x78] sm:$0xff]
        %v441 = vld [vmem:[#allocation4 + $0x80] sm:$0xff]
        %v442 = vld [vmem:[#allocation4 + $0x88] sm:$0xff]
        %v443 = vld [vmem:[#allocation4 + $0x90] sm:$0xff]
        %v444 = vld [vmem:[#allocation4 + $0x98] sm:$0xff]
        %v445 = vld [vmem:[#allocation4 + $0xa0] sm:$0xff]
        %v446 = vld [vmem:[#allocation4 + $0xa8] sm:$0xff]
        %v447 = vld [vmem:[#allocation4 + $0xb0] sm:$0xff]
        %v448 = vld [vmem:[#allocation4 + $0xb8] sm:$0xff]
        %v449 = vld [vmem:[#allocation4 + $0xc0] sm:$0xff]
        %v450 = vld [vmem:[#allocation4 + $0xc8] sm:$0xff]
        %v451 = vld [vmem:[#allocation4 + $0xd0] sm:$0xff]
        %v452 = vld [vmem:[#allocation4 + $0xd8] sm:$0xff]
        %v453 = vld [vmem:[#allocation4 + $0xe0] sm:$0xff]
        %v454 = vld [vmem:[#allocation4 + $0xe8] sm:$0xff]
        %v455 = vld [vmem:[#allocation4 + $0xf0] sm:$0xff]
        %v456 = vld [vmem:[#allocation4 + $0xf8] sm:$0xff]
        %v457 = vld [vmem:[#allocation4 + $0x100] sm:$0xff]
        %v458 = vld [vmem:[#allocation4 + $0x108] sm:$0xff]
        %v459 = vld [vmem:[#allocation4 + $0x110] sm:$0xff]
        %v460 = vld [vmem:[#allocation4 + $0x118] sm:$0xff]
        %v461 = vld [vmem:[#allocation4 + $0x120] sm:$0xff]
        %v462 = vld [vmem:[#allocation4 + $0x128] sm:$0xff]
        %v463 = vld [vmem:[#allocation4 + $0x130] sm:$0xff]
        %v464 = vld [vmem:[#allocation4 + $0x138] sm:$0xff]
        %v465 = vld [vmem:[#allocation4 + $0x140] sm:$0xff]
        %v466 = vld [vmem:[#allocation4 + $0x148] sm:$0xff]
        %v467 = vld [vmem:[#allocation4 + $0x150] sm:$0xff]
        %v468 = vld [vmem:[#allocation4 + $0x158] sm:$0xff]
        %v469 = vld [vmem:[#allocation4 + $0x160] sm:$0xff]
        %v470 = vld [vmem:[#allocation4 + $0x168] sm:$0xff]
        %v471 = vld [vmem:[#allocation4 + $0x170] sm:$0xff]
        %v472 = vld [vmem:[#allocation4 + $0x178] sm:$0xff]
        %v473 = vld [vmem:[#allocation4 + $0x180] sm:$0xff]
        %v474 = vld [vmem:[#allocation4 + $0x188] sm:$0xff]
        %v475 = vld [vmem:[#allocation4 + $0x190] sm:$0xff]
        %v476 = vld [vmem:[#allocation4 + $0x198] sm:$0xff]
        %v477 = vld [vmem:[#allocation4 + $0x1a0] sm:$0xff]
        %v478 = vld [vmem:[#allocation4 + $0x1a8] sm:$0xff]
        %v479 = vld [vmem:[#allocation4 + $0x1b0] sm:$0xff]
        %v480 = vld [vmem:[#allocation4 + $0x1b8] sm:$0xff]
        %v481 = vld [vmem:[#allocation4 + $0x1c0] sm:$0xff]
        %v482 = vld [vmem:[#allocation4 + $0x1c8] sm:$0xff]
        %v483 = vld [vmem:[#allocation4 + $0x1d0] sm:$0xff]
        %v484 = vld [vmem:[#allocation4 + $0x1d8] sm:$0xff]
        %v485 = vld [vmem:[#allocation4 + $0x1e0] sm:$0xff]
        %v486 = vld [vmem:[#allocation4 + $0x1e8] sm:$0xff]
        %v487 = vld [vmem:[#allocation4 + $0x1f0] sm:$0xff]
        %v488 = vld [vmem:[#allocation4 + $0x1f8] sm:$0xff]
        %v489 = vld [vmem:[#allocation2] sm:$0xff]
        %v490 = vld [vmem:[#allocation2 + $0x8] sm:$0xff]
        %v491 = vld [vmem:[#allocation2 + $0x10] sm:$0xff]
        %v492 = vld [vmem:[#allocation2 + $0x18] sm:$0xff]
        %v493 = vld [vmem:[#allocation2 + $0x20] sm:$0xff]
        %v494 = vld [vmem:[#allocation2 + $0x28] sm:$0xff]
        %v495 = vld [vmem:[#allocation2 + $0x30] sm:$0xff]
        %v496 = vld [vmem:[#allocation2 + $0x38] sm:$0xff]
        %v497 = vld [vmem:[#allocation2 + $0x40] sm:$0xff]
        %v498 = vld [vmem:[#allocation2 + $0x48] sm:$0xff]
        %v499 = vld [vmem:[#allocation2 + $0x50] sm:$0xff]
        %v500 = vld [vmem:[#allocation2 + $0x58] sm:$0xff]
        %v501 = vld [vmem:[#allocation2 + $0x60] sm:$0xff]
        %v502 = vld [vmem:[#allocation2 + $0x68] sm:$0xff]
        %v503 = vld [vmem:[#allocation2 + $0x70] sm:$0xff]
        %v504 = vld [vmem:[#allocation2 + $0x78] sm:$0xff]
        %v505 = vld [vmem:[#allocation2 + $0x80] sm:$0xff]
        %v506 = vld [vmem:[#allocation2 + $0x88] sm:$0xff]
        %v507 = vld [vmem:[#allocation2 + $0x90] sm:$0xff]
        %v508 = vld [vmem:[#allocation2 + $0x98] sm:$0xff]
        %v509 = vld [vmem:[#allocation2 + $0xa0] sm:$0xff]
        %v510 = vld [vmem:[#allocation2 + $0xa8] sm:$0xff]
        %v511 = vld [vmem:[#allocation2 + $0xb0] sm:$0xff]
        %v512 = vld [vmem:[#allocation2 + $0xb8] sm:$0xff]
        %v513 = vld [vmem:[#allocation2 + $0xc0] sm:$0xff]
        %v514 = vld [vmem:[#allocation2 + $0xc8] sm:$0xff]
        %v515 = vld [vmem:[#allocation2 + $0xd0] sm:$0xff]
        %v516 = vld [vmem:[#allocation2 + $0xd8] sm:$0xff]
        %v517 = vld [vmem:[#allocation2 + $0xe0] sm:$0xff]
        %v518 = vld [vmem:[#allocation2 + $0xe8] sm:$0xff]
        %v519 = vld [vmem:[#allocation2 + $0xf0] sm:$0xff]
        %v520 = vld [vmem:[#allocation2 + $0xf8] sm:$0xff]
        %v521 = vld [vmem:[#allocation2 + $0x100] sm:$0xff]
        %v522 = vld [vmem:[#allocation2 + $0x108] sm:$0xff]
        %v523 = vld [vmem:[#allocation2 + $0x110] sm:$0xff]
        %v524 = vld [vmem:[#allocation2 + $0x118] sm:$0xff]
        %v525 = vld [vmem:[#allocation2 + $0x120] sm:$0xff]
        %v526 = vld [vmem:[#allocation2 + $0x128] sm:$0xff]
        %v527 = vld [vmem:[#allocation2 + $0x130] sm:$0xff]
        %v528 = vld [vmem:[#allocation2 + $0x138] sm:$0xff]
        %v529 = vld [vmem:[#allocation2 + $0x140] sm:$0xff]
        %v530 = vld [vmem:[#allocation2 + $0x148] sm:$0xff]
        %v531 = vld [vmem:[#allocation2 + $0x150] sm:$0xff]
        %v532 = vld [vmem:[#allocation2 + $0x158] sm:$0xff]
        %v533 = vld [vmem:[#allocation2 + $0x160] sm:$0xff]
        %v534 = vld [vmem:[#allocation2 + $0x168] sm:$0xff]
        %v535 = vld [vmem:[#allocation2 + $0x170] sm:$0xff]
        %v536 = vld [vmem:[#allocation2 + $0x178] sm:$0xff]
        %v537 = vld [vmem:[#allocation2 + $0x180] sm:$0xff]
        %v538 = vld [vmem:[#allocation2 + $0x188] sm:$0xff]
        %v539 = vld [vmem:[#allocation2 + $0x190] sm:$0xff]
        %v540 = vld [vmem:[#allocation2 + $0x198] sm:$0xff]
        %v541 = vld [vmem:[#allocation2 + $0x1a0] sm:$0xff]
        %v542 = vld [vmem:[#allocation2 + $0x1a8] sm:$0xff]
        %v543 = vld [vmem:[#allocation2 + $0x1b0] sm:$0xff]
        %v544 = vld [vmem:[#allocation2 + $0x1b8] sm:$0xff]
        %v545 = vld [vmem:[#allocation2 + $0x1c0] sm:$0xff]
        %v546 = vld [vmem:[#allocation2 + $0x1c8] sm:$0xff]
        %v547 = vld [vmem:[#allocation2 + $0x1d0] sm:$0xff]
        %v548 = vld [vmem:[#allocation2 + $0x1d8] sm:$0xff]
        %v549 = vld [vmem:[#allocation2 + $0x1e0] sm:$0xff]
        %v550 = vld [vmem:[#allocation2 + $0x1e8] sm:$0xff]
        %v551 = vld [vmem:[#allocation2 + $0x1f0] sm:$0xff]
        %v552 = vld [vmem:[#allocation2 + $0x1f8] sm:$0xff]
        %v553 = vld [vmem:[%s248] sm:$0xff]
        %v554 = vld [vmem:[%s248 + $0x8] sm:$0xff]
        %v555 = vld [vmem:[%s248 + $0x10] sm:$0xff]
        %v556 = vld [vmem:[%s248 + $0x18] sm:$0xff]
        %v557 = vld [vmem:[%s248 + $0x20] sm:$0xff]
        %v558 = vld [vmem:[%s248 + $0x28] sm:$0xff]
        %v559 = vld [vmem:[%s248 + $0x30] sm:$0xff]
        %v560 = vld [vmem:[%s248 + $0x38] sm:$0xff]
        %v561 = vld [vmem:[%s248 + $0x40] sm:$0xff]
        %v562 = vld [vmem:[%s248 + $0x48] sm:$0xff]
        %v563 = vld [vmem:[%s248 + $0x50] sm:$0xff]
        %v564 = vld [vmem:[%s248 + $0x58] sm:$0xff]
        %v565 = vld [vmem:[%s248 + $0x60] sm:$0xff]
        %v566 = vld [vmem:[%s248 + $0x68] sm:$0xff]
        %v567 = vld [vmem:[%s248 + $0x70] sm:$0xff]
        %v568 = vld [vmem:[%s248 + $0x78] sm:$0xff]
        %v569 = vld [vmem:[%s248 + $0x80] sm:$0xff]
        %v570 = vld [vmem:[%s248 + $0x88] sm:$0xff]
        %v571 = vld [vmem:[%s248 + $0x90] sm:$0xff]
        %v572 = vld [vmem:[%s248 + $0x98] sm:$0xff]
        %v573 = vld [vmem:[%s248 + $0xa0] sm:$0xff]
        %v574 = vld [vmem:[%s248 + $0xa8] sm:$0xff]
        %v575 = vld [vmem:[%s248 + $0xb0] sm:$0xff]
        %v576 = vld [vmem:[%s248 + $0xb8] sm:$0xff]
        %v577 = vld [vmem:[%s248 + $0xc0] sm:$0xff]
        %v578 = vld [vmem:[%s248 + $0xc8] sm:$0xff]
        %v579 = vld [vmem:[%s248 + $0xd0] sm:$0xff]
        %v580 = vld [vmem:[%s248 + $0xd8] sm:$0xff]
        %v581 = vld [vmem:[%s248 + $0xe0] sm:$0xff]
        %v582 = vld [vmem:[%s248 + $0xe8] sm:$0xff]
        %v583 = vld [vmem:[%s248 + $0xf0] sm:$0xff]
        %v584 = vld [vmem:[%s248 + $0xf8] sm:$0xff]
        %v585 = vld [vmem:[%s248 + $0x100] sm:$0xff]
        %v586 = vld [vmem:[%s248 + $0x108] sm:$0xff]
        %v587 = vld [vmem:[%s248 + $0x110] sm:$0xff]
        %v588 = vld [vmem:[%s248 + $0x118] sm:$0xff]
        %v589 = vld [vmem:[%s248 + $0x120] sm:$0xff]
        %v590 = vld [vmem:[%s248 + $0x128] sm:$0xff]
        %v591 = vld [vmem:[%s248 + $0x130] sm:$0xff]
        %v592 = vld [vmem:[%s248 + $0x138] sm:$0xff]
        %v593 = vld [vmem:[%s248 + $0x140] sm:$0xff]
        %v594 = vld [vmem:[%s248 + $0x148] sm:$0xff]
        %v595 = vld [vmem:[%s248 + $0x150] sm:$0xff]
        %v596 = vld [vmem:[%s248 + $0x158] sm:$0xff]
        %v597 = vld [vmem:[%s248 + $0x160] sm:$0xff]
        %v598 = vld [vmem:[%s248 + $0x168] sm:$0xff]
        %v599 = vld [vmem:[%s248 + $0x170] sm:$0xff]
        %v600 = vld [vmem:[%s248 + $0x178] sm:$0xff]
        %v601 = vld [vmem:[%s248 + $0x180] sm:$0xff]
        %v602 = vld [vmem:[%s248 + $0x188] sm:$0xff]
        %v603 = vld [vmem:[%s248 + $0x190] sm:$0xff]
        %v604 = vld [vmem:[%s248 + $0x198] sm:$0xff]
        %v605 = vld [vmem:[%s248 + $0x1a0] sm:$0xff]
        %v606 = vld [vmem:[%s248 + $0x1a8] sm:$0xff]
        %v607 = vld [vmem:[%s248 + $0x1b0] sm:$0xff]
        %v608 = vld [vmem:[%s248 + $0x1b8] sm:$0xff]
        %v609 = vld [vmem:[%s248 + $0x1c0] sm:$0xff]
        %v610 = vld [vmem:[%s248 + $0x1c8] sm:$0xff]
        %v611 = vld [vmem:[%s248 + $0x1d0] sm:$0xff]
        %v612 = vld [vmem:[%s248 + $0x1d8] sm:$0xff]
        %v613 = vld [vmem:[%s248 + $0x1e0] sm:$0xff]
        %v614 = vld [vmem:[%s248 + $0x1e8] sm:$0xff]
        %v615 = vld [vmem:[%s248 + $0x1f0] sm:$0xff]
        %v616 = vld [vmem:[%s248 + $0x1f8] sm:$0xff]
        %617 = vmatprep.subr.mxu0 %v584
        %618 = vmatpush1.msra.mxu0 %v583
        %619 = vmatprep.subr.mxu0 %v582
        %620 = vmatpush1.msra.mxu0 %v581
        %621 = vmatprep.subr.mxu0 %v580
        %622 = vmatpush1.msra.mxu0 %v579
        %623 = vmatprep.subr.mxu0 %v578
        %624 = vmatpush1.msra.mxu0 %v577
        %625 = vmatprep.subr.mxu0 %v576
        %626 = vmatpush1.msra.mxu0 %v575
        %627 = vmatprep.subr.mxu0 %v574
        %628 = vmatpush1.msra.mxu0 %v573
        %629 = vmatprep.subr.mxu0 %v572
        %630 = vmatpush1.msra.mxu0 %v571
        %631 = vmatprep.subr.mxu0 %v570
        %632 = vmatpush1.msra.mxu0 %v569
        %633 = vmatprep.subr.mxu0 %v568
        %634 = vmatpush1.msra.mxu0 %v567
        %635 = vmatprep.subr.mxu0 %v566
        %636 = vmatpush1.msra.mxu0 %v565
        %637 = vmatprep.subr.mxu0 %v564
        %638 = vmatpush1.msra.mxu0 %v563
        %639 = vmatprep.subr.mxu0 %v562
        %640 = vmatpush1.msra.mxu0 %v561
        %641 = vmatprep.subr.mxu0 %v560
        %642 = vmatpush1.msra.mxu0 %v559
        %643 = vmatprep.subr.mxu0 %v558
        %644 = vmatpush1.msra.mxu0 %v557
        %645 = vmatprep.subr.mxu0 %v556
        %646 = vmatpush1.msra.mxu0 %v555
        %647 = vmatprep.subr.mxu0 %v554
        %648 = vmatpush1.msra.mxu0 %v553
        %649 = vmatprep.subr.mxu0 %v616
        %650 = vmatpush2.msra.mxu0 %v615
        %651 = vmatprep.subr.mxu0 %v614
        %652 = vmatpush2.msra.mxu0 %v613
        %653 = vmatprep.subr.mxu0 %v612
        %654 = vmatpush2.msra.mxu0 %v611
        %655 = vmatprep.subr.mxu0 %v610
        %656 = vmatpush2.msra.mxu0 %v609
        %657 = vmatprep.subr.mxu0 %v608
        %658 = vmatpush2.msra.mxu0 %v607
        %659 = vmatprep.subr.mxu0 %v606
        %660 = vmatpush2.msra.mxu0 %v605
        %661 = vmatprep.subr.mxu0 %v604
        %662 = vmatpush2.msra.mxu0 %v603
        %663 = vmatprep.subr.mxu0 %v602
        %664 = vmatpush2.msra.mxu0 %v601
        %665 = vmatprep.subr.mxu0 %v600
        %666 = vmatpush2.msra.mxu0 %v599
        %667 = vmatprep.subr.mxu0 %v598
        %668 = vmatpush2.msra.mxu0 %v597
        %669 = vmatprep.subr.mxu0 %v596
        %670 = vmatpush2.msra.mxu0 %v595
        %671 = vmatprep.subr.mxu0 %v594
        %672 = vmatpush2.msra.mxu0 %v593
        %673 = vmatprep.subr.mxu0 %v592
        %674 = vmatpush2.msra.mxu0 %v591
        %675 = vmatprep.subr.mxu0 %v590
        %676 = vmatpush2.msra.mxu0 %v589
        %677 = vmatprep.subr.mxu0 %v588
        %678 = vmatpush2.msra.mxu0 %v587
        %679 = vmatprep.subr.mxu0 %v586
        %680 = vmatpush2.msra.mxu0 %v585
        %681 = vmatprep.mubr.f32.mxu0 %v426
        %682 = vmatmul.mubr.f32.gmra.mxu0 %v425
        %v683 = vpop.f32.mrf.mxu0
        %v684 = vadd.f32 0.0, %v683
        %v685 = vpop.f32.mrf.mxu0
        %v686 = vadd.f32 0.0, %v685
        %687 = vmatprep.mubr.f32.mxu0 %v428
        %688 = vmatmul.mubr.f32.gmra.mxu0 %v427
        %v689 = vpop.f32.mrf.mxu0
        %v690 = vadd.f32 0.0, %v689
        %v691 = vpop.f32.mrf.mxu0
        %v692 = vadd.f32 0.0, %v691
        %693 = vmatprep.mubr.f32.mxu0 %v430
        %694 = vmatmul.mubr.f32.gmra.mxu0 %v429
        %v695 = vpop.f32.mrf.mxu0
        %v696 = vadd.f32 0.0, %v695
        %v697 = vpop.f32.mrf.mxu0
        %v698 = vadd.f32 0.0, %v697
        %699 = vmatprep.mubr.f32.mxu0 %v432
        %700 = vmatmul.mubr.f32.gmra.mxu0 %v431
        %v701 = vpop.f32.mrf.mxu0
        %v702 = vadd.f32 0.0, %v701
        %v703 = vpop.f32.mrf.mxu0
        %v704 = vadd.f32 0.0, %v703
        %705 = vmatprep.mubr.f32.mxu0 %v434
        %706 = vmatmul.mubr.f32.gmra.mxu0 %v433
        %v707 = vpop.f32.mrf.mxu0
        %v708 = vadd.f32 0.0, %v707
        %v709 = vpop.f32.mrf.mxu0
        %v710 = vadd.f32 0.0, %v709
        %711 = vmatprep.mubr.f32.mxu0 %v436
        %712 = vmatmul.mubr.f32.gmra.mxu0 %v435
        %v713 = vpop.f32.mrf.mxu0
        %v714 = vadd.f32 0.0, %v713
        %v715 = vpop.f32.mrf.mxu0
        %v716 = vadd.f32 0.0, %v715
        %717 = vmatprep.mubr.f32.mxu0 %v438
        %718 = vmatmul.mubr.f32.gmra.mxu0 %v437
        %v719 = vpop.f32.mrf.mxu0
        %v720 = vadd.f32 0.0, %v719
        %v721 = vpop.f32.mrf.mxu0
        %v722 = vadd.f32 0.0, %v721
        %723 = vmatprep.mubr.f32.mxu0 %v440
        %724 = vmatmul.mubr.f32.gmra.mxu0 %v439
        %v725 = vpop.f32.mrf.mxu0
        %v726 = vadd.f32 0.0, %v725
        %v727 = vpop.f32.mrf.mxu0
        %v728 = vadd.f32 0.0, %v727
        %729 = vmatprep.mubr.f32.mxu0 %v442
        %730 = vmatmul.mubr.f32.gmra.mxu0 %v441
        %v731 = vpop.f32.mrf.mxu0
        %v732 = vadd.f32 0.0, %v731
        %v733 = vpop.f32.mrf.mxu0
        %v734 = vadd.f32 0.0, %v733
        %735 = vmatprep.mubr.f32.mxu0 %v444
        %736 = vmatmul.mubr.f32.gmra.mxu0 %v443
        %v737 = vpop.f32.mrf.mxu0
        %v738 = vadd.f32 0.0, %v737
        %v739 = vpop.f32.mrf.mxu0
        %v740 = vadd.f32 0.0, %v739
        %741 = vmatprep.mubr.f32.mxu0 %v446
        %742 = vmatmul.mubr.f32.gmra.mxu0 %v445
        %v743 = vpop.f32.mrf.mxu0
        %v744 = vadd.f32 0.0, %v743
        %v745 = vpop.f32.mrf.mxu0
        %v746 = vadd.f32 0.0, %v745
        %747 = vmatprep.mubr.f32.mxu0 %v448
        %748 = vmatmul.mubr.f32.gmra.mxu0 %v447
        %v749 = vpop.f32.mrf.mxu0
        %v750 = vadd.f32 0.0, %v749
        %v751 = vpop.f32.mrf.mxu0
        %v752 = vadd.f32 0.0, %v751
        %753 = vmatprep.mubr.f32.mxu0 %v450
        %754 = vmatmul.mubr.f32.gmra.mxu0 %v449
        %v755 = vpop.f32.mrf.mxu0
        %v756 = vadd.f32 0.0, %v755
        %v757 = vpop.f32.mrf.mxu0
        %v758 = vadd.f32 0.0, %v757
        %759 = vmatprep.mubr.f32.mxu0 %v452
        %760 = vmatmul.mubr.f32.gmra.mxu0 %v451
        %v761 = vpop.f32.mrf.mxu0
        %v762 = vadd.f32 0.0, %v761
        %v763 = vpop.f32.mrf.mxu0
        %v764 = vadd.f32 0.0, %v763
        %765 = vmatprep.mubr.f32.mxu0 %v454
        %766 = vmatmul.mubr.f32.gmra.mxu0 %v453
        %v767 = vpop.f32.mrf.mxu0
        %v768 = vadd.f32 0.0, %v767
        %v769 = vpop.f32.mrf.mxu0
        %v770 = vadd.f32 0.0, %v769
        %771 = vmatprep.mubr.f32.mxu0 %v456
        %772 = vmatmul.mubr.f32.gmra.mxu0 %v455
        %v773 = vpop.f32.mrf.mxu0
        %v774 = vadd.f32 0.0, %v773
        %v775 = vpop.f32.mrf.mxu0
        %v776 = vadd.f32 0.0, %v775
        %777 = vmatprep.mubr.f32.mxu0 %v458
        %778 = vmatmul.mubr.f32.gmra.mxu0 %v457
        %v779 = vpop.f32.mrf.mxu0
        %v780 = vadd.f32 0.0, %v779
        %v781 = vpop.f32.mrf.mxu0
        %v782 = vadd.f32 0.0, %v781
        %783 = vmatprep.mubr.f32.mxu0 %v460
        %784 = vmatmul.mubr.f32.gmra.mxu0 %v459
        %v785 = vpop.f32.mrf.mxu0
        %v786 = vadd.f32 0.0, %v785
        %v787 = vpop.f32.mrf.mxu0
        %v788 = vadd.f32 0.0, %v787
        %789 = vmatprep.mubr.f32.mxu0 %v462
        %790 = vmatmul.mubr.f32.gmra.mxu0 %v461
        %v791 = vpop.f32.mrf.mxu0
        %v792 = vadd.f32 0.0, %v791
        %v793 = vpop.f32.mrf.mxu0
        %v794 = vadd.f32 0.0, %v793
        %795 = vmatprep.mubr.f32.mxu0 %v464
        %796 = vmatmul.mubr.f32.gmra.mxu0 %v463
        %v797 = vpop.f32.mrf.mxu0
        %v798 = vadd.f32 0.0, %v797
        %v799 = vpop.f32.mrf.mxu0
        %v800 = vadd.f32 0.0, %v799
        %801 = vmatprep.mubr.f32.mxu0 %v466
        %802 = vmatmul.mubr.f32.gmra.mxu0 %v465
        %v803 = vpop.f32.mrf.mxu0
        %v804 = vadd.f32 0.0, %v803
        %v805 = vpop.f32.mrf.mxu0
        %v806 = vadd.f32 0.0, %v805
        %807 = vmatprep.mubr.f32.mxu0 %v468
        %808 = vmatmul.mubr.f32.gmra.mxu0 %v467
        %v809 = vpop.f32.mrf.mxu0
        %v810 = vadd.f32 0.0, %v809
        %v811 = vpop.f32.mrf.mxu0
        %v812 = vadd.f32 0.0, %v811
        %813 = vmatprep.mubr.f32.mxu0 %v470
        %814 = vmatmul.mubr.f32.gmra.mxu0 %v469
        %v815 = vpop.f32.mrf.mxu0
        %v816 = vadd.f32 0.0, %v815
        %v817 = vpop.f32.mrf.mxu0
        %v818 = vadd.f32 0.0, %v817
        %819 = vmatprep.mubr.f32.mxu0 %v472
        %820 = vmatmul.mubr.f32.gmra.mxu0 %v471
        %v821 = vpop.f32.mrf.mxu0
        %v822 = vadd.f32 0.0, %v821
        %v823 = vpop.f32.mrf.mxu0
        %v824 = vadd.f32 0.0, %v823
        %825 = vmatprep.mubr.f32.mxu0 %v474
        %826 = vmatmul.mubr.f32.gmra.mxu0 %v473
        %v827 = vpop.f32.mrf.mxu0
        %v828 = vadd.f32 0.0, %v827
        %v829 = vpop.f32.mrf.mxu0
        %v830 = vadd.f32 0.0, %v829
        %831 = vmatprep.mubr.f32.mxu0 %v476
        %832 = vmatmul.mubr.f32.gmra.mxu0 %v475
        %v833 = vpop.f32.mrf.mxu0
        %v834 = vadd.f32 0.0, %v833
        %v835 = vpop.f32.mrf.mxu0
        %v836 = vadd.f32 0.0, %v835
        %837 = vmatprep.mubr.f32.mxu0 %v478
        %838 = vmatmul.mubr.f32.gmra.mxu0 %v477
        %v839 = vpop.f32.mrf.mxu0
        %v840 = vadd.f32 0.0, %v839
        %v841 = vpop.f32.mrf.mxu0
        %v842 = vadd.f32 0.0, %v841
        %843 = vmatprep.mubr.f32.mxu0 %v480
        %844 = vmatmul.mubr.f32.gmra.mxu0 %v479
        %v845 = vpop.f32.mrf.mxu0
        %v846 = vadd.f32 0.0, %v845
        %v847 = vpop.f32.mrf.mxu0
        %v848 = vadd.f32 0.0, %v847
        %849 = vmatprep.mubr.f32.mxu0 %v482
        %850 = vmatmul.mubr.f32.gmra.mxu0 %v481
        %v851 = vpop.f32.mrf.mxu0
        %v852 = vadd.f32 0.0, %v851
        %v853 = vpop.f32.mrf.mxu0
        %v854 = vadd.f32 0.0, %v853
        %855 = vmatprep.mubr.f32.mxu0 %v484
        %856 = vmatmul.mubr.f32.gmra.mxu0 %v483
        %v857 = vpop.f32.mrf.mxu0
        %v858 = vadd.f32 0.0, %v857
        %v859 = vpop.f32.mrf.mxu0
        %v860 = vadd.f32 0.0, %v859
        %861 = vmatprep.mubr.f32.mxu0 %v486
        %862 = vmatmul.mubr.f32.gmra.mxu0 %v485
        %v863 = vpop.f32.mrf.mxu0
        %v864 = vadd.f32 0.0, %v863
        %v865 = vpop.f32.mrf.mxu0
        %v866 = vadd.f32 0.0, %v865
        %867 = vmatprep.mubr.f32.mxu0 %v488
        %868 = vmatmul.mubr.f32.gmra.mxu0 %v487
        %v869 = vpop.f32.mrf.mxu0
        %v870 = vadd.f32 0.0, %v869
        %v871 = vpop.f32.mrf.mxu0
        %v872 = vadd.f32 0.0, %v871
        %873 = vdwg.mxu0
        %v874 = vadd.f32 %v489, %v684
        %v875 = vadd.f32 %v490, %v686
        %v876 = vadd.f32 %v491, %v690
        %v877 = vadd.f32 %v492, %v692
        %v878 = vadd.f32 %v493, %v696
        %v879 = vadd.f32 %v494, %v698
        %v880 = vadd.f32 %v495, %v702
        %v881 = vadd.f32 %v496, %v704
        %v882 = vadd.f32 %v497, %v708
        %v883 = vadd.f32 %v498, %v710
        %v884 = vadd.f32 %v499, %v714
        %v885 = vadd.f32 %v500, %v716
        %v886 = vadd.f32 %v501, %v720
        %v887 = vadd.f32 %v502, %v722
        %v888 = vadd.f32 %v503, %v726
        %v889 = vadd.f32 %v504, %v728
        %v890 = vadd.f32 %v505, %v732
        %v891 = vadd.f32 %v506, %v734
        %v892 = vadd.f32 %v507, %v738
        %v893 = vadd.f32 %v508, %v740
        %v894 = vadd.f32 %v509, %v744
        %v895 = vadd.f32 %v510, %v746
        %v896 = vadd.f32 %v511, %v750
        %v897 = vadd.f32 %v512, %v752
        %v898 = vadd.f32 %v513, %v756
        %v899 = vadd.f32 %v514, %v758
        %v900 = vadd.f32 %v515, %v762
        %v901 = vadd.f32 %v516, %v764
        %v902 = vadd.f32 %v517, %v768
        %v903 = vadd.f32 %v518, %v770
        %v904 = vadd.f32 %v519, %v774
        %v905 = vadd.f32 %v520, %v776
        %v906 = vadd.f32 %v521, %v780
        %v907 = vadd.f32 %v522, %v782
        %v908 = vadd.f32 %v523, %v786
        %v909 = vadd.f32 %v524, %v788
        %v910 = vadd.f32 %v525, %v792
        %v911 = vadd.f32 %v526, %v794
        %v912 = vadd.f32 %v527, %v798
        %v913 = vadd.f32 %v528, %v800
        %v914 = vadd.f32 %v529, %v804
        %v915 = vadd.f32 %v530, %v806
        %v916 = vadd.f32 %v531, %v810
        %v917 = vadd.f32 %v532, %v812
        %v918 = vadd.f32 %v533, %v816
        %v919 = vadd.f32 %v534, %v818
        %v920 = vadd.f32 %v535, %v822
        %v921 = vadd.f32 %v536, %v824
        %v922 = vadd.f32 %v537, %v828
        %v923 = vadd.f32 %v538, %v830
        %v924 = vadd.f32 %v539, %v834
        %v925 = vadd.f32 %v540, %v836
        %v926 = vadd.f32 %v541, %v840
        %v927 = vadd.f32 %v542, %v842
        %v928 = vadd.f32 %v543, %v846
        %v929 = vadd.f32 %v544, %v848
        %v930 = vadd.f32 %v545, %v852
        %v931 = vadd.f32 %v546, %v854
        %v932 = vadd.f32 %v547, %v858
        %v933 = vadd.f32 %v548, %v860
        %v934 = vadd.f32 %v549, %v864
        %v935 = vadd.f32 %v550, %v866
        %v936 = vadd.f32 %v551, %v870
        %v937 = vadd.f32 %v552, %v872
        %938 = vst [vmem:[#allocation2] sm:$0xff] %v874
        %939 = vst [vmem:[#allocation2 + $0x8] sm:$0xff] %v875
        %940 = vst [vmem:[#allocation2 + $0x10] sm:$0xff] %v876
        %941 = vst [vmem:[#allocation2 + $0x18] sm:$0xff] %v877
        %942 = vst [vmem:[#allocation2 + $0x20] sm:$0xff] %v878
        %943 = vst [vmem:[#allocation2 + $0x28] sm:$0xff] %v879
        %944 = vst [vmem:[#allocation2 + $0x30] sm:$0xff] %v880
        %945 = vst [vmem:[#allocation2 + $0x38] sm:$0xff] %v881
        %946 = vst [vmem:[#allocation2 + $0x40] sm:$0xff] %v882
        %947 = vst [vmem:[#allocation2 + $0x48] sm:$0xff] %v883
        %948 = vst [vmem:[#allocation2 + $0x50] sm:$0xff] %v884
        %949 = vst [vmem:[#allocation2 + $0x58] sm:$0xff] %v885
        %950 = vst [vmem:[#allocation2 + $0x60] sm:$0xff] %v886
        %951 = vst [vmem:[#allocation2 + $0x68] sm:$0xff] %v887
        %952 = vst [vmem:[#allocation2 + $0x70] sm:$0xff] %v888
        %953 = vst [vmem:[#allocation2 + $0x78] sm:$0xff] %v889
        %954 = vst [vmem:[#allocation2 + $0x80] sm:$0xff] %v890
        %955 = vst [vmem:[#allocation2 + $0x88] sm:$0xff] %v891
        %956 = vst [vmem:[#allocation2 + $0x90] sm:$0xff] %v892
        %957 = vst [vmem:[#allocation2 + $0x98] sm:$0xff] %v893
        %958 = vst [vmem:[#allocation2 + $0xa0] sm:$0xff] %v894
        %959 = vst [vmem:[#allocation2 + $0xa8] sm:$0xff] %v895
        %960 = vst [vmem:[#allocation2 + $0xb0] sm:$0xff] %v896
        %961 = vst [vmem:[#allocation2 + $0xb8] sm:$0xff] %v897
        %962 = vst [vmem:[#allocation2 + $0xc0] sm:$0xff] %v898
        %963 = vst [vmem:[#allocation2 + $0xc8] sm:$0xff] %v899
        %964 = vst [vmem:[#allocation2 + $0xd0] sm:$0xff] %v900
        %965 = vst [vmem:[#allocation2 + $0xd8] sm:$0xff] %v901
        %966 = vst [vmem:[#allocation2 + $0xe0] sm:$0xff] %v902
        %967 = vst [vmem:[#allocation2 + $0xe8] sm:$0xff] %v903
        %968 = vst [vmem:[#allocation2 + $0xf0] sm:$0xff] %v904
        %969 = vst [vmem:[#allocation2 + $0xf8] sm:$0xff] %v905
        %970 = vst [vmem:[#allocation2 + $0x100] sm:$0xff] %v906
        %971 = vst [vmem:[#allocation2 + $0x108] sm:$0xff] %v907
        %972 = vst [vmem:[#allocation2 + $0x110] sm:$0xff] %v908
        %973 = vst [vmem:[#allocation2 + $0x118] sm:$0xff] %v909
        %974 = vst [vmem:[#allocation2 + $0x120] sm:$0xff] %v910
        %975 = vst [vmem:[#allocation2 + $0x128] sm:$0xff] %v911
        %976 = vst [vmem:[#allocation2 + $0x130] sm:$0xff] %v912
        %977 = vst [vmem:[#allocation2 + $0x138] sm:$0xff] %v913
        %978 = vst [vmem:[#allocation2 + $0x140] sm:$0xff] %v914
        %979 = vst [vmem:[#allocation2 + $0x148] sm:$0xff] %v915
        %980 = vst [vmem:[#allocation2 + $0x150] sm:$0xff] %v916
        %981 = vst [vmem:[#allocation2 + $0x158] sm:$0xff] %v917
        %982 = vst [vmem:[#allocation2 + $0x160] sm:$0xff] %v918
        %983 = vst [vmem:[#allocation2 + $0x168] sm:$0xff] %v919
        %984 = vst [vmem:[#allocation2 + $0x170] sm:$0xff] %v920
        %985 = vst [vmem:[#allocation2 + $0x178] sm:$0xff] %v921
        %986 = vst [vmem:[#allocation2 + $0x180] sm:$0xff] %v922
        %987 = vst [vmem:[#allocation2 + $0x188] sm:$0xff] %v923
        %988 = vst [vmem:[#allocation2 + $0x190] sm:$0xff] %v924
        %989 = vst [vmem:[#allocation2 + $0x198] sm:$0xff] %v925
        %990 = vst [vmem:[#allocation2 + $0x1a0] sm:$0xff] %v926
        %991 = vst [vmem:[#allocation2 + $0x1a8] sm:$0xff] %v927
        %992 = vst [vmem:[#allocation2 + $0x1b0] sm:$0xff] %v928
        %993 = vst [vmem:[#allocation2 + $0x1b8] sm:$0xff] %v929
        %994 = vst [vmem:[#allocation2 + $0x1c0] sm:$0xff] %v930
        %995 = vst [vmem:[#allocation2 + $0x1c8] sm:$0xff] %v931
        %996 = vst [vmem:[#allocation2 + $0x1d0] sm:$0xff] %v932
        %997 = vst [vmem:[#allocation2 + $0x1d8] sm:$0xff] %v933
        %998 = vst [vmem:[#allocation2 + $0x1e0] sm:$0xff] %v934
        %999 = vst [vmem:[#allocation2 + $0x1e8] sm:$0xff] %v935
        %1000 = vst [vmem:[#allocation2 + $0x1f0] sm:$0xff] %v936
        %1001 = vst [vmem:[#allocation2 + $0x1f8] sm:$0xff] %v937
        %v1002 = vld [vmem:[#allocation3] sm:$0xff]
        %v1003 = vld [vmem:[#allocation3 + $0x8] sm:$0xff]
        %v1004 = vld [vmem:[#allocation3 + $0x10] sm:$0xff]
        %v1005 = vld [vmem:[#allocation3 + $0x18] sm:$0xff]
        %v1006 = vld [vmem:[#allocation3 + $0x20] sm:$0xff]
        %v1007 = vld [vmem:[#allocation3 + $0x28] sm:$0xff]
        %v1008 = vld [vmem:[#allocation3 + $0x30] sm:$0xff]
        %v1009 = vld [vmem:[#allocation3 + $0x38] sm:$0xff]
        %v1010 = vld [vmem:[#allocation3 + $0x40] sm:$0xff]
        %v1011 = vld [vmem:[#allocation3 + $0x48] sm:$0xff]
        %v1012 = vld [vmem:[#allocation3 + $0x50] sm:$0xff]
        %v1013 = vld [vmem:[#allocation3 + $0x58] sm:$0xff]
        %v1014 = vld [vmem:[#allocation3 + $0x60] sm:$0xff]
        %v1015 = vld [vmem:[#allocation3 + $0x68] sm:$0xff]
        %v1016 = vld [vmem:[#allocation3 + $0x70] sm:$0xff]
        %v1017 = vld [vmem:[#allocation3 + $0x78] sm:$0xff]
        %v1018 = vld [vmem:[#allocation3 + $0x80] sm:$0xff]
        %v1019 = vld [vmem:[#allocation3 + $0x88] sm:$0xff]
        %v1020 = vld [vmem:[#allocation3 + $0x90] sm:$0xff]
        %v1021 = vld [vmem:[#allocation3 + $0x98] sm:$0xff]
        %v1022 = vld [vmem:[#allocation3 + $0xa0] sm:$0xff]
        %v1023 = vld [vmem:[#allocation3 + $0xa8] sm:$0xff]
        %v1024 = vld [vmem:[#allocation3 + $0xb0] sm:$0xff]
        %v1025 = vld [vmem:[#allocation3 + $0xb8] sm:$0xff]
        %v1026 = vld [vmem:[#allocation3 + $0xc0] sm:$0xff]
        %v1027 = vld [vmem:[#allocation3 + $0xc8] sm:$0xff]
        %v1028 = vld [vmem:[#allocation3 + $0xd0] sm:$0xff]
        %v1029 = vld [vmem:[#allocation3 + $0xd8] sm:$0xff]
        %v1030 = vld [vmem:[#allocation3 + $0xe0] sm:$0xff]
        %v1031 = vld [vmem:[#allocation3 + $0xe8] sm:$0xff]
        %v1032 = vld [vmem:[#allocation3 + $0xf0] sm:$0xff]
        %v1033 = vld [vmem:[#allocation3 + $0xf8] sm:$0xff]
        %v1034 = vld [vmem:[#allocation3 + $0x100] sm:$0xff]
        %v1035 = vld [vmem:[#allocation3 + $0x108] sm:$0xff]
        %v1036 = vld [vmem:[#allocation3 + $0x110] sm:$0xff]
        %v1037 = vld [vmem:[#allocation3 + $0x118] sm:$0xff]
        %v1038 = vld [vmem:[#allocation3 + $0x120] sm:$0xff]
        %v1039 = vld [vmem:[#allocation3 + $0x128] sm:$0xff]
        %v1040 = vld [vmem:[#allocation3 + $0x130] sm:$0xff]
        %v1041 = vld [vmem:[#allocation3 + $0x138] sm:$0xff]
        %v1042 = vld [vmem:[#allocation3 + $0x140] sm:$0xff]
        %v1043 = vld [vmem:[#allocation3 + $0x148] sm:$0xff]
        %v1044 = vld [vmem:[#allocation3 + $0x150] sm:$0xff]
        %v1045 = vld [vmem:[#allocation3 + $0x158] sm:$0xff]
        %v1046 = vld [vmem:[#allocation3 + $0x160] sm:$0xff]
        %v1047 = vld [vmem:[#allocation3 + $0x168] sm:$0xff]
        %v1048 = vld [vmem:[#allocation3 + $0x170] sm:$0xff]
        %v1049 = vld [vmem:[#allocation3 + $0x178] sm:$0xff]
        %v1050 = vld [vmem:[#allocation3 + $0x180] sm:$0xff]
        %v1051 = vld [vmem:[#allocation3 + $0x188] sm:$0xff]
        %v1052 = vld [vmem:[#allocation3 + $0x190] sm:$0xff]
        %v1053 = vld [vmem:[#allocation3 + $0x198] sm:$0xff]
        %v1054 = vld [vmem:[#allocation3 + $0x1a0] sm:$0xff]
        %v1055 = vld [vmem:[#allocation3 + $0x1a8] sm:$0xff]
        %v1056 = vld [vmem:[#allocation3 + $0x1b0] sm:$0xff]
        %v1057 = vld [vmem:[#allocation3 + $0x1b8] sm:$0xff]
        %v1058 = vld [vmem:[#allocation3 + $0x1c0] sm:$0xff]
        %v1059 = vld [vmem:[#allocation3 + $0x1c8] sm:$0xff]
        %v1060 = vld [vmem:[#allocation3 + $0x1d0] sm:$0xff]
        %v1061 = vld [vmem:[#allocation3 + $0x1d8] sm:$0xff]
        %v1062 = vld [vmem:[#allocation3 + $0x1e0] sm:$0xff]
        %v1063 = vld [vmem:[#allocation3 + $0x1e8] sm:$0xff]
        %v1064 = vld [vmem:[#allocation3 + $0x1f0] sm:$0xff]
        %v1065 = vld [vmem:[#allocation3 + $0x1f8] sm:$0xff]
        %v1066 = vld [vmem:[%s257] sm:$0xff]
        %v1067 = vld [vmem:[%s257 + $0x8] sm:$0xff]
        %v1068 = vld [vmem:[%s257 + $0x10] sm:$0xff]
        %v1069 = vld [vmem:[%s257 + $0x18] sm:$0xff]
        %v1070 = vld [vmem:[%s257 + $0x20] sm:$0xff]
        %v1071 = vld [vmem:[%s257 + $0x28] sm:$0xff]
        %v1072 = vld [vmem:[%s257 + $0x30] sm:$0xff]
        %v1073 = vld [vmem:[%s257 + $0x38] sm:$0xff]
        %v1074 = vld [vmem:[%s257 + $0x40] sm:$0xff]
        %v1075 = vld [vmem:[%s257 + $0x48] sm:$0xff]
        %v1076 = vld [vmem:[%s257 + $0x50] sm:$0xff]
        %v1077 = vld [vmem:[%s257 + $0x58] sm:$0xff]
        %v1078 = vld [vmem:[%s257 + $0x60] sm:$0xff]
        %v1079 = vld [vmem:[%s257 + $0x68] sm:$0xff]
        %v1080 = vld [vmem:[%s257 + $0x70] sm:$0xff]
        %v1081 = vld [vmem:[%s257 + $0x78] sm:$0xff]
        %v1082 = vld [vmem:[%s257 + $0x80] sm:$0xff]
        %v1083 = vld [vmem:[%s257 + $0x88] sm:$0xff]
        %v1084 = vld [vmem:[%s257 + $0x90] sm:$0xff]
        %v1085 = vld [vmem:[%s257 + $0x98] sm:$0xff]
        %v1086 = vld [vmem:[%s257 + $0xa0] sm:$0xff]
        %v1087 = vld [vmem:[%s257 + $0xa8] sm:$0xff]
        %v1088 = vld [vmem:[%s257 + $0xb0] sm:$0xff]
        %v1089 = vld [vmem:[%s257 + $0xb8] sm:$0xff]
        %v1090 = vld [vmem:[%s257 + $0xc0] sm:$0xff]
        %v1091 = vld [vmem:[%s257 + $0xc8] sm:$0xff]
        %v1092 = vld [vmem:[%s257 + $0xd0] sm:$0xff]
        %v1093 = vld [vmem:[%s257 + $0xd8] sm:$0xff]
        %v1094 = vld [vmem:[%s257 + $0xe0] sm:$0xff]
        %v1095 = vld [vmem:[%s257 + $0xe8] sm:$0xff]
        %v1096 = vld [vmem:[%s257 + $0xf0] sm:$0xff]
        %v1097 = vld [vmem:[%s257 + $0xf8] sm:$0xff]
        %v1098 = vld [vmem:[%s257 + $0x100] sm:$0xff]
        %v1099 = vld [vmem:[%s257 + $0x108] sm:$0xff]
        %v1100 = vld [vmem:[%s257 + $0x110] sm:$0xff]
        %v1101 = vld [vmem:[%s257 + $0x118] sm:$0xff]
        %v1102 = vld [vmem:[%s257 + $0x120] sm:$0xff]
        %v1103 = vld [vmem:[%s257 + $0x128] sm:$0xff]
        %v1104 = vld [vmem:[%s257 + $0x130] sm:$0xff]
        %v1105 = vld [vmem:[%s257 + $0x138] sm:$0xff]
        %v1106 = vld [vmem:[%s257 + $0x140] sm:$0xff]
        %v1107 = vld [vmem:[%s257 + $0x148] sm:$0xff]
        %v1108 = vld [vmem:[%s257 + $0x150] sm:$0xff]
        %v1109 = vld [vmem:[%s257 + $0x158] sm:$0xff]
        %v1110 = vld [vmem:[%s257 + $0x160] sm:$0xff]
        %v1111 = vld [vmem:[%s257 + $0x168] sm:$0xff]
        %v1112 = vld [vmem:[%s257 + $0x170] sm:$0xff]
        %v1113 = vld [vmem:[%s257 + $0x178] sm:$0xff]
        %v1114 = vld [vmem:[%s257 + $0x180] sm:$0xff]
        %v1115 = vld [vmem:[%s257 + $0x188] sm:$0xff]
        %v1116 = vld [vmem:[%s257 + $0x190] sm:$0xff]
        %v1117 = vld [vmem:[%s257 + $0x198] sm:$0xff]
        %v1118 = vld [vmem:[%s257 + $0x1a0] sm:$0xff]
        %v1119 = vld [vmem:[%s257 + $0x1a8] sm:$0xff]
        %v1120 = vld [vmem:[%s257 + $0x1b0] sm:$0xff]
        %v1121 = vld [vmem:[%s257 + $0x1b8] sm:$0xff]
        %v1122 = vld [vmem:[%s257 + $0x1c0] sm:$0xff]
        %v1123 = vld [vmem:[%s257 + $0x1c8] sm:$0xff]
        %v1124 = vld [vmem:[%s257 + $0x1d0] sm:$0xff]
        %v1125 = vld [vmem:[%s257 + $0x1d8] sm:$0xff]
        %v1126 = vld [vmem:[%s257 + $0x1e0] sm:$0xff]
        %v1127 = vld [vmem:[%s257 + $0x1e8] sm:$0xff]
        %v1128 = vld [vmem:[%s257 + $0x1f0] sm:$0xff]
        %v1129 = vld [vmem:[%s257 + $0x1f8] sm:$0xff]
        %1130 = vmatprep.subr.mxu0 %v1097
        %1131 = vmatpush1.msra.mxu0 %v1096
        %1132 = vmatprep.subr.mxu0 %v1095
        %1133 = vmatpush1.msra.mxu0 %v1094
        %1134 = vmatprep.subr.mxu0 %v1093
        %1135 = vmatpush1.msra.mxu0 %v1092
        %1136 = vmatprep.subr.mxu0 %v1091
        %1137 = vmatpush1.msra.mxu0 %v1090
        %1138 = vmatprep.subr.mxu0 %v1089
        %1139 = vmatpush1.msra.mxu0 %v1088
        %1140 = vmatprep.subr.mxu0 %v1087
        %1141 = vmatpush1.msra.mxu0 %v1086
        %1142 = vmatprep.subr.mxu0 %v1085
        %1143 = vmatpush1.msra.mxu0 %v1084
        %1144 = vmatprep.subr.mxu0 %v1083
        %1145 = vmatpush1.msra.mxu0 %v1082
        %1146 = vmatprep.subr.mxu0 %v1081
        %1147 = vmatpush1.msra.mxu0 %v1080
        %1148 = vmatprep.subr.mxu0 %v1079
        %1149 = vmatpush1.msra.mxu0 %v1078
        %1150 = vmatprep.subr.mxu0 %v1077
        %1151 = vmatpush1.msra.mxu0 %v1076
        %1152 = vmatprep.subr.mxu0 %v1075
        %1153 = vmatpush1.msra.mxu0 %v1074
        %1154 = vmatprep.subr.mxu0 %v1073
        %1155 = vmatpush1.msra.mxu0 %v1072
        %1156 = vmatprep.subr.mxu0 %v1071
        %1157 = vmatpush1.msra.mxu0 %v1070
        %1158 = vmatprep.subr.mxu0 %v1069
        %1159 = vmatpush1.msra.mxu0 %v1068
        %1160 = vmatprep.subr.mxu0 %v1067
        %1161 = vmatpush1.msra.mxu0 %v1066
        %1162 = vmatprep.subr.mxu0 %v1129
        %1163 = vmatpush2.msra.mxu0 %v1128
        %1164 = vmatprep.subr.mxu0 %v1127
        %1165 = vmatpush2.msra.mxu0 %v1126
        %1166 = vmatprep.subr.mxu0 %v1125
        %1167 = vmatpush2.msra.mxu0 %v1124
        %1168 = vmatprep.subr.mxu0 %v1123
        %1169 = vmatpush2.msra.mxu0 %v1122
        %1170 = vmatprep.subr.mxu0 %v1121
        %1171 = vmatpush2.msra.mxu0 %v1120
        %1172 = vmatprep.subr.mxu0 %v1119
        %1173 = vmatpush2.msra.mxu0 %v1118
        %1174 = vmatprep.subr.mxu0 %v1117
        %1175 = vmatpush2.msra.mxu0 %v1116
        %1176 = vmatprep.subr.mxu0 %v1115
        %1177 = vmatpush2.msra.mxu0 %v1114
        %1178 = vmatprep.subr.mxu0 %v1113
        %1179 = vmatpush2.msra.mxu0 %v1112
        %1180 = vmatprep.subr.mxu0 %v1111
        %1181 = vmatpush2.msra.mxu0 %v1110
        %1182 = vmatprep.subr.mxu0 %v1109
        %1183 = vmatpush2.msra.mxu0 %v1108
        %1184 = vmatprep.subr.mxu0 %v1107
        %1185 = vmatpush2.msra.mxu0 %v1106
        %1186 = vmatprep.subr.mxu0 %v1105
        %1187 = vmatpush2.msra.mxu0 %v1104
        %1188 = vmatprep.subr.mxu0 %v1103
        %1189 = vmatpush2.msra.mxu0 %v1102
        %1190 = vmatprep.subr.mxu0 %v1101
        %1191 = vmatpush2.msra.mxu0 %v1100
        %1192 = vmatprep.subr.mxu0 %v1099
        %1193 = vmatpush2.msra.mxu0 %v1098
        %1194 = vmatprep.mubr.f32.mxu0 %v426
        %1195 = vmatmul.mubr.f32.gmra.mxu0 %v425
        %v1196 = vpop.f32.mrf.mxu0
        %v1197 = vadd.f32 0.0, %v1196
        %v1198 = vpop.f32.mrf.mxu0
        %v1199 = vadd.f32 0.0, %v1198
        %1200 = vmatprep.mubr.f32.mxu0 %v428
        %1201 = vmatmul.mubr.f32.gmra.mxu0 %v427
        %v1202 = vpop.f32.mrf.mxu0
        %v1203 = vadd.f32 0.0, %v1202
        %v1204 = vpop.f32.mrf.mxu0
        %v1205 = vadd.f32 0.0, %v1204
        %1206 = vmatprep.mubr.f32.mxu0 %v430
        %1207 = vmatmul.mubr.f32.gmra.mxu0 %v429
        %v1208 = vpop.f32.mrf.mxu0
        %v1209 = vadd.f32 0.0, %v1208
        %v1210 = vpop.f32.mrf.mxu0
        %v1211 = vadd.f32 0.0, %v1210
        %1212 = vmatprep.mubr.f32.mxu0 %v432
        %1213 = vmatmul.mubr.f32.gmra.mxu0 %v431
        %v1214 = vpop.f32.mrf.mxu0
        %v1215 = vadd.f32 0.0, %v1214
        %v1216 = vpop.f32.mrf.mxu0
        %v1217 = vadd.f32 0.0, %v1216
        %1218 = vmatprep.mubr.f32.mxu0 %v434
        %1219 = vmatmul.mubr.f32.gmra.mxu0 %v433
        %v1220 = vpop.f32.mrf.mxu0
        %v1221 = vadd.f32 0.0, %v1220
        %v1222 = vpop.f32.mrf.mxu0
        %v1223 = vadd.f32 0.0, %v1222
        %1224 = vmatprep.mubr.f32.mxu0 %v436
        %1225 = vmatmul.mubr.f32.gmra.mxu0 %v435
        %v1226 = vpop.f32.mrf.mxu0
        %v1227 = vadd.f32 0.0, %v1226
        %v1228 = vpop.f32.mrf.mxu0
        %v1229 = vadd.f32 0.0, %v1228
        %1230 = vmatprep.mubr.f32.mxu0 %v438
        %1231 = vmatmul.mubr.f32.gmra.mxu0 %v437
        %v1232 = vpop.f32.mrf.mxu0
        %v1233 = vadd.f32 0.0, %v1232
        %v1234 = vpop.f32.mrf.mxu0
        %v1235 = vadd.f32 0.0, %v1234
        %1236 = vmatprep.mubr.f32.mxu0 %v440
        %1237 = vmatmul.mubr.f32.gmra.mxu0 %v439
        %v1238 = vpop.f32.mrf.mxu0
        %v1239 = vadd.f32 0.0, %v1238
        %v1240 = vpop.f32.mrf.mxu0
        %v1241 = vadd.f32 0.0, %v1240
        %1242 = vmatprep.mubr.f32.mxu0 %v442
        %1243 = vmatmul.mubr.f32.gmra.mxu0 %v441
        %v1244 = vpop.f32.mrf.mxu0
        %v1245 = vadd.f32 0.0, %v1244
        %v1246 = vpop.f32.mrf.mxu0
        %v1247 = vadd.f32 0.0, %v1246
        %1248 = vmatprep.mubr.f32.mxu0 %v444
        %1249 = vmatmul.mubr.f32.gmra.mxu0 %v443
        %v1250 = vpop.f32.mrf.mxu0
        %v1251 = vadd.f32 0.0, %v1250
        %v1252 = vpop.f32.mrf.mxu0
        %v1253 = vadd.f32 0.0, %v1252
        %1254 = vmatprep.mubr.f32.mxu0 %v446
        %1255 = vmatmul.mubr.f32.gmra.mxu0 %v445
        %v1256 = vpop.f32.mrf.mxu0
        %v1257 = vadd.f32 0.0, %v1256
        %v1258 = vpop.f32.mrf.mxu0
        %v1259 = vadd.f32 0.0, %v1258
        %1260 = vmatprep.mubr.f32.mxu0 %v448
        %1261 = vmatmul.mubr.f32.gmra.mxu0 %v447
        %v1262 = vpop.f32.mrf.mxu0
        %v1263 = vadd.f32 0.0, %v1262
        %v1264 = vpop.f32.mrf.mxu0
        %v1265 = vadd.f32 0.0, %v1264
        %1266 = vmatprep.mubr.f32.mxu0 %v450
        %1267 = vmatmul.mubr.f32.gmra.mxu0 %v449
        %v1268 = vpop.f32.mrf.mxu0
        %v1269 = vadd.f32 0.0, %v1268
        %v1270 = vpop.f32.mrf.mxu0
        %v1271 = vadd.f32 0.0, %v1270
        %1272 = vmatprep.mubr.f32.mxu0 %v452
        %1273 = vmatmul.mubr.f32.gmra.mxu0 %v451
        %v1274 = vpop.f32.mrf.mxu0
        %v1275 = vadd.f32 0.0, %v1274
        %v1276 = vpop.f32.mrf.mxu0
        %v1277 = vadd.f32 0.0, %v1276
        %1278 = vmatprep.mubr.f32.mxu0 %v454
        %1279 = vmatmul.mubr.f32.gmra.mxu0 %v453
        %v1280 = vpop.f32.mrf.mxu0
        %v1281 = vadd.f32 0.0, %v1280
        %v1282 = vpop.f32.mrf.mxu0
        %v1283 = vadd.f32 0.0, %v1282
        %1284 = vmatprep.mubr.f32.mxu0 %v456
        %1285 = vmatmul.mubr.f32.gmra.mxu0 %v455
        %v1286 = vpop.f32.mrf.mxu0
        %v1287 = vadd.f32 0.0, %v1286
        %v1288 = vpop.f32.mrf.mxu0
        %v1289 = vadd.f32 0.0, %v1288
        %1290 = vmatprep.mubr.f32.mxu0 %v458
        %1291 = vmatmul.mubr.f32.gmra.mxu0 %v457
        %v1292 = vpop.f32.mrf.mxu0
        %v1293 = vadd.f32 0.0, %v1292
        %v1294 = vpop.f32.mrf.mxu0
        %v1295 = vadd.f32 0.0, %v1294
        %1296 = vmatprep.mubr.f32.mxu0 %v460
        %1297 = vmatmul.mubr.f32.gmra.mxu0 %v459
        %v1298 = vpop.f32.mrf.mxu0
        %v1299 = vadd.f32 0.0, %v1298
        %v1300 = vpop.f32.mrf.mxu0
        %v1301 = vadd.f32 0.0, %v1300
        %1302 = vmatprep.mubr.f32.mxu0 %v462
        %1303 = vmatmul.mubr.f32.gmra.mxu0 %v461
        %v1304 = vpop.f32.mrf.mxu0
        %v1305 = vadd.f32 0.0, %v1304
        %v1306 = vpop.f32.mrf.mxu0
        %v1307 = vadd.f32 0.0, %v1306
        %1308 = vmatprep.mubr.f32.mxu0 %v464
        %1309 = vmatmul.mubr.f32.gmra.mxu0 %v463
        %v1310 = vpop.f32.mrf.mxu0
        %v1311 = vadd.f32 0.0, %v1310
        %v1312 = vpop.f32.mrf.mxu0
        %v1313 = vadd.f32 0.0, %v1312
        %1314 = vmatprep.mubr.f32.mxu0 %v466
        %1315 = vmatmul.mubr.f32.gmra.mxu0 %v465
        %v1316 = vpop.f32.mrf.mxu0
        %v1317 = vadd.f32 0.0, %v1316
        %v1318 = vpop.f32.mrf.mxu0
        %v1319 = vadd.f32 0.0, %v1318
        %1320 = vmatprep.mubr.f32.mxu0 %v468
        %1321 = vmatmul.mubr.f32.gmra.mxu0 %v467
        %v1322 = vpop.f32.mrf.mxu0
        %v1323 = vadd.f32 0.0, %v1322
        %v1324 = vpop.f32.mrf.mxu0
        %v1325 = vadd.f32 0.0, %v1324
        %1326 = vmatprep.mubr.f32.mxu0 %v470
        %1327 = vmatmul.mubr.f32.gmra.mxu0 %v469
        %v1328 = vpop.f32.mrf.mxu0
        %v1329 = vadd.f32 0.0, %v1328
        %v1330 = vpop.f32.mrf.mxu0
        %v1331 = vadd.f32 0.0, %v1330
        %1332 = vmatprep.mubr.f32.mxu0 %v472
        %1333 = vmatmul.mubr.f32.gmra.mxu0 %v471
        %v1334 = vpop.f32.mrf.mxu0
        %v1335 = vadd.f32 0.0, %v1334
        %v1336 = vpop.f32.mrf.mxu0
        %v1337 = vadd.f32 0.0, %v1336
        %1338 = vmatprep.mubr.f32.mxu0 %v474
        %1339 = vmatmul.mubr.f32.gmra.mxu0 %v473
        %v1340 = vpop.f32.mrf.mxu0
        %v1341 = vadd.f32 0.0, %v1340
        %v1342 = vpop.f32.mrf.mxu0
        %v1343 = vadd.f32 0.0, %v1342
        %1344 = vmatprep.mubr.f32.mxu0 %v476
        %1345 = vmatmul.mubr.f32.gmra.mxu0 %v475
        %v1346 = vpop.f32.mrf.mxu0
        %v1347 = vadd.f32 0.0, %v1346
        %v1348 = vpop.f32.mrf.mxu0
        %v1349 = vadd.f32 0.0, %v1348
        %1350 = vmatprep.mubr.f32.mxu0 %v478
        %1351 = vmatmul.mubr.f32.gmra.mxu0 %v477
        %v1352 = vpop.f32.mrf.mxu0
        %v1353 = vadd.f32 0.0, %v1352
        %v1354 = vpop.f32.mrf.mxu0
        %v1355 = vadd.f32 0.0, %v1354
        %1356 = vmatprep.mubr.f32.mxu0 %v480
        %1357 = vmatmul.mubr.f32.gmra.mxu0 %v479
        %v1358 = vpop.f32.mrf.mxu0
        %v1359 = vadd.f32 0.0, %v1358
        %v1360 = vpop.f32.mrf.mxu0
        %v1361 = vadd.f32 0.0, %v1360
        %1362 = vmatprep.mubr.f32.mxu0 %v482
        %1363 = vmatmul.mubr.f32.gmra.mxu0 %v481
        %v1364 = vpop.f32.mrf.mxu0
        %v1365 = vadd.f32 0.0, %v1364
        %v1366 = vpop.f32.mrf.mxu0
        %v1367 = vadd.f32 0.0, %v1366
        %1368 = vmatprep.mubr.f32.mxu0 %v484
        %1369 = vmatmul.mubr.f32.gmra.mxu0 %v483
        %v1370 = vpop.f32.mrf.mxu0
        %v1371 = vadd.f32 0.0, %v1370
        %v1372 = vpop.f32.mrf.mxu0
        %v1373 = vadd.f32 0.0, %v1372
        %1374 = vmatprep.mubr.f32.mxu0 %v486
        %1375 = vmatmul.mubr.f32.gmra.mxu0 %v485
        %v1376 = vpop.f32.mrf.mxu0
        %v1377 = vadd.f32 0.0, %v1376
        %v1378 = vpop.f32.mrf.mxu0
        %v1379 = vadd.f32 0.0, %v1378
        %1380 = vmatprep.mubr.f32.mxu0 %v488
        %1381 = vmatmul.mubr.f32.gmra.mxu0 %v487
        %v1382 = vpop.f32.mrf.mxu0
        %v1383 = vadd.f32 0.0, %v1382
        %v1384 = vpop.f32.mrf.mxu0
        %v1385 = vadd.f32 0.0, %v1384
        %1386 = vdwg.mxu0
        %v1387 = vadd.f32 %v1002, %v1197
        %v1388 = vadd.f32 %v1003, %v1199
        %v1389 = vadd.f32 %v1004, %v1203
        %v1390 = vadd.f32 %v1005, %v1205
        %v1391 = vadd.f32 %v1006, %v1209
        %v1392 = vadd.f32 %v1007, %v1211
        %v1393 = vadd.f32 %v1008, %v1215
        %v1394 = vadd.f32 %v1009, %v1217
        %v1395 = vadd.f32 %v1010, %v1221
        %v1396 = vadd.f32 %v1011, %v1223
        %v1397 = vadd.f32 %v1012, %v1227
        %v1398 = vadd.f32 %v1013, %v1229
        %v1399 = vadd.f32 %v1014, %v1233
        %v1400 = vadd.f32 %v1015, %v1235
        %v1401 = vadd.f32 %v1016, %v1239
        %v1402 = vadd.f32 %v1017, %v1241
        %v1403 = vadd.f32 %v1018, %v1245
        %v1404 = vadd.f32 %v1019, %v1247
        %v1405 = vadd.f32 %v1020, %v1251
        %v1406 = vadd.f32 %v1021, %v1253
        %v1407 = vadd.f32 %v1022, %v1257
        %v1408 = vadd.f32 %v1023, %v1259
        %v1409 = vadd.f32 %v1024, %v1263
        %v1410 = vadd.f32 %v1025, %v1265
        %v1411 = vadd.f32 %v1026, %v1269
        %v1412 = vadd.f32 %v1027, %v1271
        %v1413 = vadd.f32 %v1028, %v1275
        %v1414 = vadd.f32 %v1029, %v1277
        %v1415 = vadd.f32 %v1030, %v1281
        %v1416 = vadd.f32 %v1031, %v1283
        %v1417 = vadd.f32 %v1032, %v1287
        %v1418 = vadd.f32 %v1033, %v1289
        %v1419 = vadd.f32 %v1034, %v1293
        %v1420 = vadd.f32 %v1035, %v1295
        %v1421 = vadd.f32 %v1036, %v1299
        %v1422 = vadd.f32 %v1037, %v1301
        %v1423 = vadd.f32 %v1038, %v1305
        %v1424 = vadd.f32 %v1039, %v1307
        %v1425 = vadd.f32 %v1040, %v1311
        %v1426 = vadd.f32 %v1041, %v1313
        %v1427 = vadd.f32 %v1042, %v1317
        %v1428 = vadd.f32 %v1043, %v1319
        %v1429 = vadd.f32 %v1044, %v1323
        %v1430 = vadd.f32 %v1045, %v1325
        %v1431 = vadd.f32 %v1046, %v1329
        %v1432 = vadd.f32 %v1047, %v1331
        %v1433 = vadd.f32 %v1048, %v1335
        %v1434 = vadd.f32 %v1049, %v1337
        %v1435 = vadd.f32 %v1050, %v1341
        %v1436 = vadd.f32 %v1051, %v1343
        %v1437 = vadd.f32 %v1052, %v1347
        %v1438 = vadd.f32 %v1053, %v1349
        %v1439 = vadd.f32 %v1054, %v1353
        %v1440 = vadd.f32 %v1055, %v1355
        %v1441 = vadd.f32 %v1056, %v1359
        %v1442 = vadd.f32 %v1057, %v1361
        %v1443 = vadd.f32 %v1058, %v1365
        %v1444 = vadd.f32 %v1059, %v1367
        %v1445 = vadd.f32 %v1060, %v1371
        %v1446 = vadd.f32 %v1061, %v1373
        %v1447 = vadd.f32 %v1062, %v1377
        %v1448 = vadd.f32 %v1063, %v1379
        %v1449 = vadd.f32 %v1064, %v1383
        %v1450 = vadd.f32 %v1065, %v1385
        %1451 = vst [vmem:[#allocation3] sm:$0xff] %v1387
        %1452 = vst [vmem:[#allocation3 + $0x8] sm:$0xff] %v1388
        %1453 = vst [vmem:[#allocation3 + $0x10] sm:$0xff] %v1389
        %1454 = vst [vmem:[#allocation3 + $0x18] sm:$0xff] %v1390
        %1455 = vst [vmem:[#allocation3 + $0x20] sm:$0xff] %v1391
        %1456 = vst [vmem:[#allocation3 + $0x28] sm:$0xff] %v1392
        %1457 = vst [vmem:[#allocation3 + $0x30] sm:$0xff] %v1393
        %1458 = vst [vmem:[#allocation3 + $0x38] sm:$0xff] %v1394
        %1459 = vst [vmem:[#allocation3 + $0x40] sm:$0xff] %v1395
        %1460 = vst [vmem:[#allocation3 + $0x48] sm:$0xff] %v1396
        %1461 = vst [vmem:[#allocation3 + $0x50] sm:$0xff] %v1397
        %1462 = vst [vmem:[#allocation3 + $0x58] sm:$0xff] %v1398
        %1463 = vst [vmem:[#allocation3 + $0x60] sm:$0xff] %v1399
        %1464 = vst [vmem:[#allocation3 + $0x68] sm:$0xff] %v1400
        %1465 = vst [vmem:[#allocation3 + $0x70] sm:$0xff] %v1401
        %1466 = vst [vmem:[#allocation3 + $0x78] sm:$0xff] %v1402
        %1467 = vst [vmem:[#allocation3 + $0x80] sm:$0xff] %v1403
        %1468 = vst [vmem:[#allocation3 + $0x88] sm:$0xff] %v1404
        %1469 = vst [vmem:[#allocation3 + $0x90] sm:$0xff] %v1405
        %1470 = vst [vmem:[#allocation3 + $0x98] sm:$0xff] %v1406
        %1471 = vst [vmem:[#allocation3 + $0xa0] sm:$0xff] %v1407
        %1472 = vst [vmem:[#allocation3 + $0xa8] sm:$0xff] %v1408
        %1473 = vst [vmem:[#allocation3 + $0xb0] sm:$0xff] %v1409
        %1474 = vst [vmem:[#allocation3 + $0xb8] sm:$0xff] %v1410
        %1475 = vst [vmem:[#allocation3 + $0xc0] sm:$0xff] %v1411
        %1476 = vst [vmem:[#allocation3 + $0xc8] sm:$0xff] %v1412
        %1477 = vst [vmem:[#allocation3 + $0xd0] sm:$0xff] %v1413
        %1478 = vst [vmem:[#allocation3 + $0xd8] sm:$0xff] %v1414
        %1479 = vst [vmem:[#allocation3 + $0xe0] sm:$0xff] %v1415
        %1480 = vst [vmem:[#allocation3 + $0xe8] sm:$0xff] %v1416
        %1481 = vst [vmem:[#allocation3 + $0xf0] sm:$0xff] %v1417
        %1482 = vst [vmem:[#allocation3 + $0xf8] sm:$0xff] %v1418
        %1483 = vst [vmem:[#allocation3 + $0x100] sm:$0xff] %v1419
        %1484 = vst [vmem:[#allocation3 + $0x108] sm:$0xff] %v1420
        %1485 = vst [vmem:[#allocation3 + $0x110] sm:$0xff] %v1421
        %1486 = vst [vmem:[#allocation3 + $0x118] sm:$0xff] %v1422
        %1487 = vst [vmem:[#allocation3 + $0x120] sm:$0xff] %v1423
        %1488 = vst [vmem:[#allocation3 + $0x128] sm:$0xff] %v1424
        %1489 = vst [vmem:[#allocation3 + $0x130] sm:$0xff] %v1425
        %1490 = vst [vmem:[#allocation3 + $0x138] sm:$0xff] %v1426
        %1491 = vst [vmem:[#allocation3 + $0x140] sm:$0xff] %v1427
        %1492 = vst [vmem:[#allocation3 + $0x148] sm:$0xff] %v1428
        %1493 = vst [vmem:[#allocation3 + $0x150] sm:$0xff] %v1429
        %1494 = vst [vmem:[#allocation3 + $0x158] sm:$0xff] %v1430
        %1495 = vst [vmem:[#allocation3 + $0x160] sm:$0xff] %v1431
        %1496 = vst [vmem:[#allocation3 + $0x168] sm:$0xff] %v1432
        %1497 = vst [vmem:[#allocation3 + $0x170] sm:$0xff] %v1433
        %1498 = vst [vmem:[#allocation3 + $0x178] sm:$0xff] %v1434
        %1499 = vst [vmem:[#allocation3 + $0x180] sm:$0xff] %v1435
        %1500 = vst [vmem:[#allocation3 + $0x188] sm:$0xff] %v1436
        %1501 = vst [vmem:[#allocation3 + $0x190] sm:$0xff] %v1437
        %1502 = vst [vmem:[#allocation3 + $0x198] sm:$0xff] %v1438
        %1503 = vst [vmem:[#allocation3 + $0x1a0] sm:$0xff] %v1439
        %1504 = vst [vmem:[#allocation3 + $0x1a8] sm:$0xff] %v1440
        %1505 = vst [vmem:[#allocation3 + $0x1b0] sm:$0xff] %v1441
        %1506 = vst [vmem:[#allocation3 + $0x1b8] sm:$0xff] %v1442
        %1507 = vst [vmem:[#allocation3 + $0x1c0] sm:$0xff] %v1443
        %1508 = vst [vmem:[#allocation3 + $0x1c8] sm:$0xff] %v1444
        %1509 = vst [vmem:[#allocation3 + $0x1d0] sm:$0xff] %v1445
        %1510 = vst [vmem:[#allocation3 + $0x1d8] sm:$0xff] %v1446
        %1511 = vst [vmem:[#allocation3 + $0x1e0] sm:$0xff] %v1447
        %1512 = vst [vmem:[#allocation3 + $0x1e8] sm:$0xff] %v1448
        %1513 = vst [vmem:[#allocation3 + $0x1f0] sm:$0xff] %v1449
        %1514 = vst [vmem:[#allocation3 + $0x1f8] sm:$0xff] %v1450
        // Predicated region
        $region49: #{tpu_custom_call.1} parent=31 // pred_check
          %p1515 = pneg %p293
        $region50: #{tpu_custom_call.1} parent=31 // pred_check_branch
          %1517 = sbr.rel (%p1515) target = $region52
        $region51: #{tpu_custom_call.1} parent=31 // pred_region
          %v1518 = vld [vmem:[#allocation2] sm:$0xff]
          %v1519 = vld [vmem:[#allocation2 + $0x8] sm:$0xff]
          %v1520 = vld [vmem:[#allocation2 + $0x10] sm:$0xff]
          %v1521 = vld [vmem:[#allocation2 + $0x18] sm:$0xff]
          %v1522 = vld [vmem:[#allocation2 + $0x20] sm:$0xff]
          %v1523 = vld [vmem:[#allocation2 + $0x28] sm:$0xff]
          %v1524 = vld [vmem:[#allocation2 + $0x30] sm:$0xff]
          %v1525 = vld [vmem:[#allocation2 + $0x38] sm:$0xff]
          %v1526 = vld [vmem:[#allocation2 + $0x40] sm:$0xff]
          %v1527 = vld [vmem:[#allocation2 + $0x48] sm:$0xff]
          %v1528 = vld [vmem:[#allocation2 + $0x50] sm:$0xff]
          %v1529 = vld [vmem:[#allocation2 + $0x58] sm:$0xff]
          %v1530 = vld [vmem:[#allocation2 + $0x60] sm:$0xff]
          %v1531 = vld [vmem:[#allocation2 + $0x68] sm:$0xff]
          %v1532 = vld [vmem:[#allocation2 + $0x70] sm:$0xff]
          %v1533 = vld [vmem:[#allocation2 + $0x78] sm:$0xff]
          %v1534 = vld [vmem:[#allocation2 + $0x80] sm:$0xff]
          %v1535 = vld [vmem:[#allocation2 + $0x88] sm:$0xff]
          %v1536 = vld [vmem:[#allocation2 + $0x90] sm:$0xff]
          %v1537 = vld [vmem:[#allocation2 + $0x98] sm:$0xff]
          %v1538 = vld [vmem:[#allocation2 + $0xa0] sm:$0xff]
          %v1539 = vld [vmem:[#allocation2 + $0xa8] sm:$0xff]
          %v1540 = vld [vmem:[#allocation2 + $0xb0] sm:$0xff]
          %v1541 = vld [vmem:[#allocation2 + $0xb8] sm:$0xff]
          %v1542 = vld [vmem:[#allocation2 + $0xc0] sm:$0xff]
          %v1543 = vld [vmem:[#allocation2 + $0xc8] sm:$0xff]
          %v1544 = vld [vmem:[#allocation2 + $0xd0] sm:$0xff]
          %v1545 = vld [vmem:[#allocation2 + $0xd8] sm:$0xff]
          %v1546 = vld [vmem:[#allocation2 + $0xe0] sm:$0xff]
          %v1547 = vld [vmem:[#allocation2 + $0xe8] sm:$0xff]
          %v1548 = vld [vmem:[#allocation2 + $0xf0] sm:$0xff]
          %v1549 = vld [vmem:[#allocation2 + $0xf8] sm:$0xff]
          %v1550 = vld [vmem:[#allocation2 + $0x100] sm:$0xff]
          %v1551 = vld [vmem:[#allocation2 + $0x108] sm:$0xff]
          %v1552 = vld [vmem:[#allocation2 + $0x110] sm:$0xff]
          %v1553 = vld [vmem:[#allocation2 + $0x118] sm:$0xff]
          %v1554 = vld [vmem:[#allocation2 + $0x120] sm:$0xff]
          %v1555 = vld [vmem:[#allocation2 + $0x128] sm:$0xff]
          %v1556 = vld [vmem:[#allocation2 + $0x130] sm:$0xff]
          %v1557 = vld [vmem:[#allocation2 + $0x138] sm:$0xff]
          %v1558 = vld [vmem:[#allocation2 + $0x140] sm:$0xff]
          %v1559 = vld [vmem:[#allocation2 + $0x148] sm:$0xff]
          %v1560 = vld [vmem:[#allocation2 + $0x150] sm:$0xff]
          %v1561 = vld [vmem:[#allocation2 + $0x158] sm:$0xff]
          %v1562 = vld [vmem:[#allocation2 + $0x160] sm:$0xff]
          %v1563 = vld [vmem:[#allocation2 + $0x168] sm:$0xff]
          %v1564 = vld [vmem:[#allocation2 + $0x170] sm:$0xff]
          %v1565 = vld [vmem:[#allocation2 + $0x178] sm:$0xff]
          %v1566 = vld [vmem:[#allocation2 + $0x180] sm:$0xff]
          %v1567 = vld [vmem:[#allocation2 + $0x188] sm:$0xff]
          %v1568 = vld [vmem:[#allocation2 + $0x190] sm:$0xff]
          %v1569 = vld [vmem:[#allocation2 + $0x198] sm:$0xff]
          %v1570 = vld [vmem:[#allocation2 + $0x1a0] sm:$0xff]
          %v1571 = vld [vmem:[#allocation2 + $0x1a8] sm:$0xff]
          %v1572 = vld [vmem:[#allocation2 + $0x1b0] sm:$0xff]
          %v1573 = vld [vmem:[#allocation2 + $0x1b8] sm:$0xff]
          %v1574 = vld [vmem:[#allocation2 + $0x1c0] sm:$0xff]
          %v1575 = vld [vmem:[#allocation2 + $0x1c8] sm:$0xff]
          %v1576 = vld [vmem:[#allocation2 + $0x1d0] sm:$0xff]
          %v1577 = vld [vmem:[#allocation2 + $0x1d8] sm:$0xff]
          %v1578 = vld [vmem:[#allocation2 + $0x1e0] sm:$0xff]
          %v1579 = vld [vmem:[#allocation2 + $0x1e8] sm:$0xff]
          %v1580 = vld [vmem:[#allocation2 + $0x1f0] sm:$0xff]
          %v1581 = vld [vmem:[#allocation2 + $0x1f8] sm:$0xff]
          %v1582 = vxor.u32 %v1518, 2147483648
          %v1583 = vxor.u32 %v1519, 2147483648
          %v1584 = vxor.u32 %v1520, 2147483648
          %v1585 = vxor.u32 %v1521, 2147483648
          %v1586 = vxor.u32 %v1522, 2147483648
          %v1587 = vxor.u32 %v1523, 2147483648
          %v1588 = vxor.u32 %v1524, 2147483648
          %v1589 = vxor.u32 %v1525, 2147483648
          %v1590 = vxor.u32 %v1526, 2147483648
          %v1591 = vxor.u32 %v1527, 2147483648
          %v1592 = vxor.u32 %v1528, 2147483648
          %v1593 = vxor.u32 %v1529, 2147483648
          %v1594 = vxor.u32 %v1530, 2147483648
          %v1595 = vxor.u32 %v1531, 2147483648
          %v1596 = vxor.u32 %v1532, 2147483648
          %v1597 = vxor.u32 %v1533, 2147483648
          %v1598 = vxor.u32 %v1534, 2147483648
          %v1599 = vxor.u32 %v1535, 2147483648
          %v1600 = vxor.u32 %v1536, 2147483648
          %v1601 = vxor.u32 %v1537, 2147483648
          %v1602 = vxor.u32 %v1538, 2147483648
          %v1603 = vxor.u32 %v1539, 2147483648
          %v1604 = vxor.u32 %v1540, 2147483648
          %v1605 = vxor.u32 %v1541, 2147483648
          %v1606 = vxor.u32 %v1542, 2147483648
          %v1607 = vxor.u32 %v1543, 2147483648
          %v1608 = vxor.u32 %v1544, 2147483648
          %v1609 = vxor.u32 %v1545, 2147483648
          %v1610 = vxor.u32 %v1546, 2147483648
          %v1611 = vxor.u32 %v1547, 2147483648
          %v1612 = vxor.u32 %v1548, 2147483648
          %v1613 = vxor.u32 %v1549, 2147483648
          %v1614 = vxor.u32 %v1550, 2147483648
          %v1615 = vxor.u32 %v1551, 2147483648
          %v1616 = vxor.u32 %v1552, 2147483648
          %v1617 = vxor.u32 %v1553, 2147483648
          %v1618 = vxor.u32 %v1554, 2147483648
          %v1619 = vxor.u32 %v1555, 2147483648
          %v1620 = vxor.u32 %v1556, 2147483648
          %v1621 = vxor.u32 %v1557, 2147483648
          %v1622 = vxor.u32 %v1558, 2147483648
          %v1623 = vxor.u32 %v1559, 2147483648
          %v1624 = vxor.u32 %v1560, 2147483648
          %v1625 = vxor.u32 %v1561, 2147483648
          %v1626 = vxor.u32 %v1562, 2147483648
          %v1627 = vxor.u32 %v1563, 2147483648
          %v1628 = vxor.u32 %v1564, 2147483648
          %v1629 = vxor.u32 %v1565, 2147483648
          %v1630 = vxor.u32 %v1566, 2147483648
          %v1631 = vxor.u32 %v1567, 2147483648
          %v1632 = vxor.u32 %v1568, 2147483648
          %v1633 = vxor.u32 %v1569, 2147483648
          %v1634 = vxor.u32 %v1570, 2147483648
          %v1635 = vxor.u32 %v1571, 2147483648
          %v1636 = vxor.u32 %v1572, 2147483648
          %v1637 = vxor.u32 %v1573, 2147483648
          %v1638 = vxor.u32 %v1574, 2147483648
          %v1639 = vxor.u32 %v1575, 2147483648
          %v1640 = vxor.u32 %v1576, 2147483648
          %v1641 = vxor.u32 %v1577, 2147483648
          %v1642 = vxor.u32 %v1578, 2147483648
          %v1643 = vxor.u32 %v1579, 2147483648
          %v1644 = vxor.u32 %v1580, 2147483648
          %v1645 = vxor.u32 %v1581, 2147483648
          %v1646 = vmul.f32 %v1582, 1.442695
          %v1647 = vpow.pop %v1646
          %v1648 = vmul.f32 %v1583, 1.442695
          %v1649 = vpow.pop %v1648
          %v1650 = vmul.f32 %v1584, 1.442695
          %v1651 = vpow.pop %v1650
          %v1652 = vmul.f32 %v1585, 1.442695
          %v1653 = vpow.pop %v1652
          %v1654 = vmul.f32 %v1586, 1.442695
          %v1655 = vpow.pop %v1654
          %v1656 = vmul.f32 %v1587, 1.442695
          %v1657 = vpow.pop %v1656
          %v1658 = vmul.f32 %v1588, 1.442695
          %v1659 = vpow.pop %v1658
          %v1660 = vmul.f32 %v1589, 1.442695
          %v1661 = vpow.pop %v1660
          %v1662 = vmul.f32 %v1590, 1.442695
          %v1663 = vpow.pop %v1662
          %v1664 = vmul.f32 %v1591, 1.442695
          %v1665 = vpow.pop %v1664
          %v1666 = vmul.f32 %v1592, 1.442695
          %v1667 = vpow.pop %v1666
          %v1668 = vmul.f32 %v1593, 1.442695
          %v1669 = vpow.pop %v1668
          %v1670 = vmul.f32 %v1594, 1.442695
          %v1671 = vpow.pop %v1670
          %v1672 = vmul.f32 %v1595, 1.442695
          %v1673 = vpow.pop %v1672
          %v1674 = vmul.f32 %v1596, 1.442695
          %v1675 = vpow.pop %v1674
          %v1676 = vmul.f32 %v1597, 1.442695
          %v1677 = vpow.pop %v1676
          %v1678 = vmul.f32 %v1598, 1.442695
          %v1679 = vpow.pop %v1678
          %v1680 = vmul.f32 %v1599, 1.442695
          %v1681 = vpow.pop %v1680
          %v1682 = vmul.f32 %v1600, 1.442695
          %v1683 = vpow.pop %v1682
          %v1684 = vmul.f32 %v1601, 1.442695
          %v1685 = vpow.pop %v1684
          %v1686 = vmul.f32 %v1602, 1.442695
          %v1687 = vpow.pop %v1686
          %v1688 = vmul.f32 %v1603, 1.442695
          %v1689 = vpow.pop %v1688
          %v1690 = vmul.f32 %v1604, 1.442695
          %v1691 = vpow.pop %v1690
          %v1692 = vmul.f32 %v1605, 1.442695
          %v1693 = vpow.pop %v1692
          %v1694 = vmul.f32 %v1606, 1.442695
          %v1695 = vpow.pop %v1694
          %v1696 = vmul.f32 %v1607, 1.442695
          %v1697 = vpow.pop %v1696
          %v1698 = vmul.f32 %v1608, 1.442695
          %v1699 = vpow.pop %v1698
          %v1700 = vmul.f32 %v1609, 1.442695
          %v1701 = vpow.pop %v1700
          %v1702 = vmul.f32 %v1610, 1.442695
          %v1703 = vpow.pop %v1702
          %v1704 = vmul.f32 %v1611, 1.442695
          %v1705 = vpow.pop %v1704
          %v1706 = vmul.f32 %v1612, 1.442695
          %v1707 = vpow.pop %v1706
          %v1708 = vmul.f32 %v1613, 1.442695
          %v1709 = vpow.pop %v1708
          %v1710 = vmul.f32 %v1614, 1.442695
          %v1711 = vpow.pop %v1710
          %v1712 = vmul.f32 %v1615, 1.442695
          %v1713 = vpow.pop %v1712
          %v1714 = vmul.f32 %v1616, 1.442695
          %v1715 = vpow.pop %v1714
          %v1716 = vmul.f32 %v1617, 1.442695
          %v1717 = vpow.pop %v1716
          %v1718 = vmul.f32 %v1618, 1.442695
          %v1719 = vpow.pop %v1718
          %v1720 = vmul.f32 %v1619, 1.442695
          %v1721 = vpow.pop %v1720
          %v1722 = vmul.f32 %v1620, 1.442695
          %v1723 = vpow.pop %v1722
          %v1724 = vmul.f32 %v1621, 1.442695
          %v1725 = vpow.pop %v1724
          %v1726 = vmul.f32 %v1622, 1.442695
          %v1727 = vpow.pop %v1726
          %v1728 = vmul.f32 %v1623, 1.442695
          %v1729 = vpow.pop %v1728
          %v1730 = vmul.f32 %v1624, 1.442695
          %v1731 = vpow.pop %v1730
          %v1732 = vmul.f32 %v1625, 1.442695
          %v1733 = vpow.pop %v1732
          %v1734 = vmul.f32 %v1626, 1.442695
          %v1735 = vpow.pop %v1734
          %v1736 = vmul.f32 %v1627, 1.442695
          %v1737 = vpow.pop %v1736
          %v1738 = vmul.f32 %v1628, 1.442695
          %v1739 = vpow.pop %v1738
          %v1740 = vmul.f32 %v1629, 1.442695
          %v1741 = vpow.pop %v1740
          %v1742 = vmul.f32 %v1630, 1.442695
          %v1743 = vpow.pop %v1742
          %v1744 = vmul.f32 %v1631, 1.442695
          %v1745 = vpow.pop %v1744
          %v1746 = vmul.f32 %v1632, 1.442695
          %v1747 = vpow.pop %v1746
          %v1748 = vmul.f32 %v1633, 1.442695
          %v1749 = vpow.pop %v1748
          %v1750 = vmul.f32 %v1634, 1.442695
          %v1751 = vpow.pop %v1750
          %v1752 = vmul.f32 %v1635, 1.442695
          %v1753 = vpow.pop %v1752
          %v1754 = vmul.f32 %v1636, 1.442695
          %v1755 = vpow.pop %v1754
          %v1756 = vmul.f32 %v1637, 1.442695
          %v1757 = vpow.pop %v1756
          %v1758 = vmul.f32 %v1638, 1.442695
          %v1759 = vpow.pop %v1758
          %v1760 = vmul.f32 %v1639, 1.442695
          %v1761 = vpow.pop %v1760
          %v1762 = vmul.f32 %v1640, 1.442695
          %v1763 = vpow.pop %v1762
          %v1764 = vmul.f32 %v1641, 1.442695
          %v1765 = vpow.pop %v1764
          %v1766 = vmul.f32 %v1642, 1.442695
          %v1767 = vpow.pop %v1766
          %v1768 = vmul.f32 %v1643, 1.442695
          %v1769 = vpow.pop %v1768
          %v1770 = vmul.f32 %v1644, 1.442695
          %v1771 = vpow.pop %v1770
          %v1772 = vmul.f32 %v1645, 1.442695
          %v1773 = vpow.pop %v1772
          %v1774 = vadd.f32 %v1647, 1.0
          %v1775 = vadd.f32 %v1649, 1.0
          %v1776 = vadd.f32 %v1651, 1.0
          %v1777 = vadd.f32 %v1653, 1.0
          %v1778 = vadd.f32 %v1655, 1.0
          %v1779 = vadd.f32 %v1657, 1.0
          %v1780 = vadd.f32 %v1659, 1.0
          %v1781 = vadd.f32 %v1661, 1.0
          %v1782 = vadd.f32 %v1663, 1.0
          %v1783 = vadd.f32 %v1665, 1.0
          %v1784 = vadd.f32 %v1667, 1.0
          %v1785 = vadd.f32 %v1669, 1.0
          %v1786 = vadd.f32 %v1671, 1.0
          %v1787 = vadd.f32 %v1673, 1.0
          %v1788 = vadd.f32 %v1675, 1.0
          %v1789 = vadd.f32 %v1677, 1.0
          %v1790 = vadd.f32 %v1679, 1.0
          %v1791 = vadd.f32 %v1681, 1.0
          %v1792 = vadd.f32 %v1683, 1.0
          %v1793 = vadd.f32 %v1685, 1.0
          %v1794 = vadd.f32 %v1687, 1.0
          %v1795 = vadd.f32 %v1689, 1.0
          %v1796 = vadd.f32 %v1691, 1.0
          %v1797 = vadd.f32 %v1693, 1.0
          %v1798 = vadd.f32 %v1695, 1.0
          %v1799 = vadd.f32 %v1697, 1.0
          %v1800 = vadd.f32 %v1699, 1.0
          %v1801 = vadd.f32 %v1701, 1.0
          %v1802 = vadd.f32 %v1703, 1.0
          %v1803 = vadd.f32 %v1705, 1.0
          %v1804 = vadd.f32 %v1707, 1.0
          %v1805 = vadd.f32 %v1709, 1.0
          %v1806 = vadd.f32 %v1711, 1.0
          %v1807 = vadd.f32 %v1713, 1.0
          %v1808 = vadd.f32 %v1715, 1.0
          %v1809 = vadd.f32 %v1717, 1.0
          %v1810 = vadd.f32 %v1719, 1.0
          %v1811 = vadd.f32 %v1721, 1.0
          %v1812 = vadd.f32 %v1723, 1.0
          %v1813 = vadd.f32 %v1725, 1.0
          %v1814 = vadd.f32 %v1727, 1.0
          %v1815 = vadd.f32 %v1729, 1.0
          %v1816 = vadd.f32 %v1731, 1.0
          %v1817 = vadd.f32 %v1733, 1.0
          %v1818 = vadd.f32 %v1735, 1.0
          %v1819 = vadd.f32 %v1737, 1.0
          %v1820 = vadd.f32 %v1739, 1.0
          %v1821 = vadd.f32 %v1741, 1.0
          %v1822 = vadd.f32 %v1743, 1.0
          %v1823 = vadd.f32 %v1745, 1.0
          %v1824 = vadd.f32 %v1747, 1.0
          %v1825 = vadd.f32 %v1749, 1.0
          %v1826 = vadd.f32 %v1751, 1.0
          %v1827 = vadd.f32 %v1753, 1.0
          %v1828 = vadd.f32 %v1755, 1.0
          %v1829 = vadd.f32 %v1757, 1.0
          %v1830 = vadd.f32 %v1759, 1.0
          %v1831 = vadd.f32 %v1761, 1.0
          %v1832 = vadd.f32 %v1763, 1.0
          %v1833 = vadd.f32 %v1765, 1.0
          %v1834 = vadd.f32 %v1767, 1.0
          %v1835 = vadd.f32 %v1769, 1.0
          %v1836 = vadd.f32 %v1771, 1.0
          %v1837 = vadd.f32 %v1773, 1.0
          %v1838 = vrcp.pop %v1774
          %v1839 = vmul.f32 1.0, %v1838
          %v1840 = vrcp.pop %v1775
          %v1841 = vmul.f32 1.0, %v1840
          %v1842 = vrcp.pop %v1776
          %v1843 = vmul.f32 1.0, %v1842
          %v1844 = vrcp.pop %v1777
          %v1845 = vmul.f32 1.0, %v1844
          %v1846 = vrcp.pop %v1778
          %v1847 = vmul.f32 1.0, %v1846
          %v1848 = vrcp.pop %v1779
          %v1849 = vmul.f32 1.0, %v1848
          %v1850 = vrcp.pop %v1780
          %v1851 = vmul.f32 1.0, %v1850
          %v1852 = vrcp.pop %v1781
          %v1853 = vmul.f32 1.0, %v1852
          %v1854 = vrcp.pop %v1782
          %v1855 = vmul.f32 1.0, %v1854
          %v1856 = vrcp.pop %v1783
          %v1857 = vmul.f32 1.0, %v1856
          %v1858 = vrcp.pop %v1784
          %v1859 = vmul.f32 1.0, %v1858
          %v1860 = vrcp.pop %v1785
          %v1861 = vmul.f32 1.0, %v1860
          %v1862 = vrcp.pop %v1786
          %v1863 = vmul.f32 1.0, %v1862
          %v1864 = vrcp.pop %v1787
          %v1865 = vmul.f32 1.0, %v1864
          %v1866 = vrcp.pop %v1788
          %v1867 = vmul.f32 1.0, %v1866
          %v1868 = vrcp.pop %v1789
          %v1869 = vmul.f32 1.0, %v1868
          %v1870 = vrcp.pop %v1790
          %v1871 = vmul.f32 1.0, %v1870
          %v1872 = vrcp.pop %v1791
          %v1873 = vmul.f32 1.0, %v1872
          %v1874 = vrcp.pop %v1792
          %v1875 = vmul.f32 1.0, %v1874
          %v1876 = vrcp.pop %v1793
          %v1877 = vmul.f32 1.0, %v1876
          %v1878 = vrcp.pop %v1794
          %v1879 = vmul.f32 1.0, %v1878
          %v1880 = vrcp.pop %v1795
          %v1881 = vmul.f32 1.0, %v1880
          %v1882 = vrcp.pop %v1796
          %v1883 = vmul.f32 1.0, %v1882
          %v1884 = vrcp.pop %v1797
          %v1885 = vmul.f32 1.0, %v1884
          %v1886 = vrcp.pop %v1798
          %v1887 = vmul.f32 1.0, %v1886
          %v1888 = vrcp.pop %v1799
          %v1889 = vmul.f32 1.0, %v1888
          %v1890 = vrcp.pop %v1800
          %v1891 = vmul.f32 1.0, %v1890
          %v1892 = vrcp.pop %v1801
          %v1893 = vmul.f32 1.0, %v1892
          %v1894 = vrcp.pop %v1802
          %v1895 = vmul.f32 1.0, %v1894
          %v1896 = vrcp.pop %v1803
          %v1897 = vmul.f32 1.0, %v1896
          %v1898 = vrcp.pop %v1804
          %v1899 = vmul.f32 1.0, %v1898
          %v1900 = vrcp.pop %v1805
          %v1901 = vmul.f32 1.0, %v1900
          %v1902 = vrcp.pop %v1806
          %v1903 = vmul.f32 1.0, %v1902
          %v1904 = vrcp.pop %v1807
          %v1905 = vmul.f32 1.0, %v1904
          %v1906 = vrcp.pop %v1808
          %v1907 = vmul.f32 1.0, %v1906
          %v1908 = vrcp.pop %v1809
          %v1909 = vmul.f32 1.0, %v1908
          %v1910 = vrcp.pop %v1810
          %v1911 = vmul.f32 1.0, %v1910
          %v1912 = vrcp.pop %v1811
          %v1913 = vmul.f32 1.0, %v1912
          %v1914 = vrcp.pop %v1812
          %v1915 = vmul.f32 1.0, %v1914
          %v1916 = vrcp.pop %v1813
          %v1917 = vmul.f32 1.0, %v1916
          %v1918 = vrcp.pop %v1814
          %v1919 = vmul.f32 1.0, %v1918
          %v1920 = vrcp.pop %v1815
          %v1921 = vmul.f32 1.0, %v1920
          %v1922 = vrcp.pop %v1816
          %v1923 = vmul.f32 1.0, %v1922
          %v1924 = vrcp.pop %v1817
          %v1925 = vmul.f32 1.0, %v1924
          %v1926 = vrcp.pop %v1818
          %v1927 = vmul.f32 1.0, %v1926
          %v1928 = vrcp.pop %v1819
          %v1929 = vmul.f32 1.0, %v1928
          %v1930 = vrcp.pop %v1820
          %v1931 = vmul.f32 1.0, %v1930
          %v1932 = vrcp.pop %v1821
          %v1933 = vmul.f32 1.0, %v1932
          %v1934 = vrcp.pop %v1822
          %v1935 = vmul.f32 1.0, %v1934
          %v1936 = vrcp.pop %v1823
          %v1937 = vmul.f32 1.0, %v1936
          %v1938 = vrcp.pop %v1824
          %v1939 = vmul.f32 1.0, %v1938
          %v1940 = vrcp.pop %v1825
          %v1941 = vmul.f32 1.0, %v1940
          %v1942 = vrcp.pop %v1826
          %v1943 = vmul.f32 1.0, %v1942
          %v1944 = vrcp.pop %v1827
          %v1945 = vmul.f32 1.0, %v1944
          %v1946 = vrcp.pop %v1828
          %v1947 = vmul.f32 1.0, %v1946
          %v1948 = vrcp.pop %v1829
          %v1949 = vmul.f32 1.0, %v1948
          %v1950 = vrcp.pop %v1830
          %v1951 = vmul.f32 1.0, %v1950
          %v1952 = vrcp.pop %v1831
          %v1953 = vmul.f32 1.0, %v1952
          %v1954 = vrcp.pop %v1832
          %v1955 = vmul.f32 1.0, %v1954
          %v1956 = vrcp.pop %v1833
          %v1957 = vmul.f32 1.0, %v1956
          %v1958 = vrcp.pop %v1834
          %v1959 = vmul.f32 1.0, %v1958
          %v1960 = vrcp.pop %v1835
          %v1961 = vmul.f32 1.0, %v1960
          %v1962 = vrcp.pop %v1836
          %v1963 = vmul.f32 1.0, %v1962
          %v1964 = vrcp.pop %v1837
          %v1965 = vmul.f32 1.0, %v1964
          %v1966 = vmul.f32 %v1518, %v1839
          %v1967 = vmul.f32 %v1519, %v1841
          %v1968 = vmul.f32 %v1520, %v1843
          %v1969 = vmul.f32 %v1521, %v1845
          %v1970 = vmul.f32 %v1522, %v1847
          %v1971 = vmul.f32 %v1523, %v1849
          %v1972 = vmul.f32 %v1524, %v1851
          %v1973 = vmul.f32 %v1525, %v1853
          %v1974 = vmul.f32 %v1526, %v1855
          %v1975 = vmul.f32 %v1527, %v1857
          %v1976 = vmul.f32 %v1528, %v1859
          %v1977 = vmul.f32 %v1529, %v1861
          %v1978 = vmul.f32 %v1530, %v1863
          %v1979 = vmul.f32 %v1531, %v1865
          %v1980 = vmul.f32 %v1532, %v1867
          %v1981 = vmul.f32 %v1533, %v1869
          %v1982 = vmul.f32 %v1534, %v1871
          %v1983 = vmul.f32 %v1535, %v1873
          %v1984 = vmul.f32 %v1536, %v1875
          %v1985 = vmul.f32 %v1537, %v1877
          %v1986 = vmul.f32 %v1538, %v1879
          %v1987 = vmul.f32 %v1539, %v1881
          %v1988 = vmul.f32 %v1540, %v1883
          %v1989 = vmul.f32 %v1541, %v1885
          %v1990 = vmul.f32 %v1542, %v1887
          %v1991 = vmul.f32 %v1543, %v1889
          %v1992 = vmul.f32 %v1544, %v1891
          %v1993 = vmul.f32 %v1545, %v1893
          %v1994 = vmul.f32 %v1546, %v1895
          %v1995 = vmul.f32 %v1547, %v1897
          %v1996 = vmul.f32 %v1548, %v1899
          %v1997 = vmul.f32 %v1549, %v1901
          %v1998 = vmul.f32 %v1550, %v1903
          %v1999 = vmul.f32 %v1551, %v1905
          %v2000 = vmul.f32 %v1552, %v1907
          %v2001 = vmul.f32 %v1553, %v1909
          %v2002 = vmul.f32 %v1554, %v1911
          %v2003 = vmul.f32 %v1555, %v1913
          %v2004 = vmul.f32 %v1556, %v1915
          %v2005 = vmul.f32 %v1557, %v1917
          %v2006 = vmul.f32 %v1558, %v1919
          %v2007 = vmul.f32 %v1559, %v1921
          %v2008 = vmul.f32 %v1560, %v1923
          %v2009 = vmul.f32 %v1561, %v1925
          %v2010 = vmul.f32 %v1562, %v1927
          %v2011 = vmul.f32 %v1563, %v1929
          %v2012 = vmul.f32 %v1564, %v1931
          %v2013 = vmul.f32 %v1565, %v1933
          %v2014 = vmul.f32 %v1566, %v1935
          %v2015 = vmul.f32 %v1567, %v1937
          %v2016 = vmul.f32 %v1568, %v1939
          %v2017 = vmul.f32 %v1569, %v1941
          %v2018 = vmul.f32 %v1570, %v1943
          %v2019 = vmul.f32 %v1571, %v1945
          %v2020 = vmul.f32 %v1572, %v1947
          %v2021 = vmul.f32 %v1573, %v1949
          %v2022 = vmul.f32 %v1574, %v1951
          %v2023 = vmul.f32 %v1575, %v1953
          %v2024 = vmul.f32 %v1576, %v1955
          %v2025 = vmul.f32 %v1577, %v1957
          %v2026 = vmul.f32 %v1578, %v1959
          %v2027 = vmul.f32 %v1579, %v1961
          %v2028 = vmul.f32 %v1580, %v1963
          %v2029 = vmul.f32 %v1581, %v1965
          %v2030 = vld [vmem:[#allocation3] sm:$0xff]
          %v2031 = vld [vmem:[#allocation3 + $0x8] sm:$0xff]
          %v2032 = vld [vmem:[#allocation3 + $0x10] sm:$0xff]
          %v2033 = vld [vmem:[#allocation3 + $0x18] sm:$0xff]
          %v2034 = vld [vmem:[#allocation3 + $0x20] sm:$0xff]
          %v2035 = vld [vmem:[#allocation3 + $0x28] sm:$0xff]
          %v2036 = vld [vmem:[#allocation3 + $0x30] sm:$0xff]
          %v2037 = vld [vmem:[#allocation3 + $0x38] sm:$0xff]
          %v2038 = vld [vmem:[#allocation3 + $0x40] sm:$0xff]
          %v2039 = vld [vmem:[#allocation3 + $0x48] sm:$0xff]
          %v2040 = vld [vmem:[#allocation3 + $0x50] sm:$0xff]
          %v2041 = vld [vmem:[#allocation3 + $0x58] sm:$0xff]
          %v2042 = vld [vmem:[#allocation3 + $0x60] sm:$0xff]
          %v2043 = vld [vmem:[#allocation3 + $0x68] sm:$0xff]
          %v2044 = vld [vmem:[#allocation3 + $0x70] sm:$0xff]
          %v2045 = vld [vmem:[#allocation3 + $0x78] sm:$0xff]
          %v2046 = vld [vmem:[#allocation3 + $0x80] sm:$0xff]
          %v2047 = vld [vmem:[#allocation3 + $0x88] sm:$0xff]
          %v2048 = vld [vmem:[#allocation3 + $0x90] sm:$0xff]
          %v2049 = vld [vmem:[#allocation3 + $0x98] sm:$0xff]
          %v2050 = vld [vmem:[#allocation3 + $0xa0] sm:$0xff]
          %v2051 = vld [vmem:[#allocation3 + $0xa8] sm:$0xff]
          %v2052 = vld [vmem:[#allocation3 + $0xb0] sm:$0xff]
          %v2053 = vld [vmem:[#allocation3 + $0xb8] sm:$0xff]
          %v2054 = vld [vmem:[#allocation3 + $0xc0] sm:$0xff]
          %v2055 = vld [vmem:[#allocation3 + $0xc8] sm:$0xff]
          %v2056 = vld [vmem:[#allocation3 + $0xd0] sm:$0xff]
          %v2057 = vld [vmem:[#allocation3 + $0xd8] sm:$0xff]
          %v2058 = vld [vmem:[#allocation3 + $0xe0] sm:$0xff]
          %v2059 = vld [vmem:[#allocation3 + $0xe8] sm:$0xff]
          %v2060 = vld [vmem:[#allocation3 + $0xf0] sm:$0xff]
          %v2061 = vld [vmem:[#allocation3 + $0xf8] sm:$0xff]
          %v2062 = vld [vmem:[#allocation3 + $0x100] sm:$0xff]
          %v2063 = vld [vmem:[#allocation3 + $0x108] sm:$0xff]
          %v2064 = vld [vmem:[#allocation3 + $0x110] sm:$0xff]
          %v2065 = vld [vmem:[#allocation3 + $0x118] sm:$0xff]
          %v2066 = vld [vmem:[#allocation3 + $0x120] sm:$0xff]
          %v2067 = vld [vmem:[#allocation3 + $0x128] sm:$0xff]
          %v2068 = vld [vmem:[#allocation3 + $0x130] sm:$0xff]
          %v2069 = vld [vmem:[#allocation3 + $0x138] sm:$0xff]
          %v2070 = vld [vmem:[#allocation3 + $0x140] sm:$0xff]
          %v2071 = vld [vmem:[#allocation3 + $0x148] sm:$0xff]
          %v2072 = vld [vmem:[#allocation3 + $0x150] sm:$0xff]
          %v2073 = vld [vmem:[#allocation3 + $0x158] sm:$0xff]
          %v2074 = vld [vmem:[#allocation3 + $0x160] sm:$0xff]
          %v2075 = vld [vmem:[#allocation3 + $0x168] sm:$0xff]
          %v2076 = vld [vmem:[#allocation3 + $0x170] sm:$0xff]
          %v2077 = vld [vmem:[#allocation3 + $0x178] sm:$0xff]
          %v2078 = vld [vmem:[#allocation3 + $0x180] sm:$0xff]
          %v2079 = vld [vmem:[#allocation3 + $0x188] sm:$0xff]
          %v2080 = vld [vmem:[#allocation3 + $0x190] sm:$0xff]
          %v2081 = vld [vmem:[#allocation3 + $0x198] sm:$0xff]
          %v2082 = vld [vmem:[#allocation3 + $0x1a0] sm:$0xff]
          %v2083 = vld [vmem:[#allocation3 + $0x1a8] sm:$0xff]
          %v2084 = vld [vmem:[#allocation3 + $0x1b0] sm:$0xff]
          %v2085 = vld [vmem:[#allocation3 + $0x1b8] sm:$0xff]
          %v2086 = vld [vmem:[#allocation3 + $0x1c0] sm:$0xff]
          %v2087 = vld [vmem:[#allocation3 + $0x1c8] sm:$0xff]
          %v2088 = vld [vmem:[#allocation3 + $0x1d0] sm:$0xff]
          %v2089 = vld [vmem:[#allocation3 + $0x1d8] sm:$0xff]
          %v2090 = vld [vmem:[#allocation3 + $0x1e0] sm:$0xff]
          %v2091 = vld [vmem:[#allocation3 + $0x1e8] sm:$0xff]
          %v2092 = vld [vmem:[#allocation3 + $0x1f0] sm:$0xff]
          %v2093 = vld [vmem:[#allocation3 + $0x1f8] sm:$0xff]
          %v2094 = vmul.f32 %v1966, %v2030
          %v2095 = vmul.f32 %v1967, %v2031
          %v2096 = vmul.f32 %v1968, %v2032
          %v2097 = vmul.f32 %v1969, %v2033
          %v2098 = vmul.f32 %v1970, %v2034
          %v2099 = vmul.f32 %v1971, %v2035
          %v2100 = vmul.f32 %v1972, %v2036
          %v2101 = vmul.f32 %v1973, %v2037
          %v2102 = vmul.f32 %v1974, %v2038
          %v2103 = vmul.f32 %v1975, %v2039
          %v2104 = vmul.f32 %v1976, %v2040
          %v2105 = vmul.f32 %v1977, %v2041
          %v2106 = vmul.f32 %v1978, %v2042
          %v2107 = vmul.f32 %v1979, %v2043
          %v2108 = vmul.f32 %v1980, %v2044
          %v2109 = vmul.f32 %v1981, %v2045
          %v2110 = vmul.f32 %v1982, %v2046
          %v2111 = vmul.f32 %v1983, %v2047
          %v2112 = vmul.f32 %v1984, %v2048
          %v2113 = vmul.f32 %v1985, %v2049
          %v2114 = vmul.f32 %v1986, %v2050
          %v2115 = vmul.f32 %v1987, %v2051
          %v2116 = vmul.f32 %v1988, %v2052
          %v2117 = vmul.f32 %v1989, %v2053
          %v2118 = vmul.f32 %v1990, %v2054
          %v2119 = vmul.f32 %v1991, %v2055
          %v2120 = vmul.f32 %v1992, %v2056
          %v2121 = vmul.f32 %v1993, %v2057
          %v2122 = vmul.f32 %v1994, %v2058
          %v2123 = vmul.f32 %v1995, %v2059
          %v2124 = vmul.f32 %v1996, %v2060
          %v2125 = vmul.f32 %v1997, %v2061
          %v2126 = vmul.f32 %v1998, %v2062
          %v2127 = vmul.f32 %v1999, %v2063
          %v2128 = vmul.f32 %v2000, %v2064
          %v2129 = vmul.f32 %v2001, %v2065
          %v2130 = vmul.f32 %v2002, %v2066
          %v2131 = vmul.f32 %v2003, %v2067
          %v2132 = vmul.f32 %v2004, %v2068
          %v2133 = vmul.f32 %v2005, %v2069
          %v2134 = vmul.f32 %v2006, %v2070
          %v2135 = vmul.f32 %v2007, %v2071
          %v2136 = vmul.f32 %v2008, %v2072
          %v2137 = vmul.f32 %v2009, %v2073
          %v2138 = vmul.f32 %v2010, %v2074
          %v2139 = vmul.f32 %v2011, %v2075
          %v2140 = vmul.f32 %v2012, %v2076
          %v2141 = vmul.f32 %v2013, %v2077
          %v2142 = vmul.f32 %v2014, %v2078
          %v2143 = vmul.f32 %v2015, %v2079
          %v2144 = vmul.f32 %v2016, %v2080
          %v2145 = vmul.f32 %v2017, %v2081
          %v2146 = vmul.f32 %v2018, %v2082
          %v2147 = vmul.f32 %v2019, %v2083
          %v2148 = vmul.f32 %v2020, %v2084
          %v2149 = vmul.f32 %v2021, %v2085
          %v2150 = vmul.f32 %v2022, %v2086
          %v2151 = vmul.f32 %v2023, %v2087
          %v2152 = vmul.f32 %v2024, %v2088
          %v2153 = vmul.f32 %v2025, %v2089
          %v2154 = vmul.f32 %v2026, %v2090
          %v2155 = vmul.f32 %v2027, %v2091
          %v2156 = vmul.f32 %v2028, %v2092
          %v2157 = vmul.f32 %v2029, %v2093
          %2158 = vst [vmem:[%s284] sm:$0xff] %v2094
          %2159 = vst [vmem:[%s284 + $0x8] sm:$0xff] %v2095
          %2160 = vst [vmem:[%s284 + $0x10] sm:$0xff] %v2096
          %2161 = vst [vmem:[%s284 + $0x18] sm:$0xff] %v2097
          %2162 = vst [vmem:[%s284 + $0x20] sm:$0xff] %v2098
          %2163 = vst [vmem:[%s284 + $0x28] sm:$0xff] %v2099
          %2164 = vst [vmem:[%s284 + $0x30] sm:$0xff] %v2100
          %2165 = vst [vmem:[%s284 + $0x38] sm:$0xff] %v2101
          %2166 = vst [vmem:[%s284 + $0x40] sm:$0xff] %v2102
          %2167 = vst [vmem:[%s284 + $0x48] sm:$0xff] %v2103
          %2168 = vst [vmem:[%s284 + $0x50] sm:$0xff] %v2104
          %2169 = vst [vmem:[%s284 + $0x58] sm:$0xff] %v2105
          %2170 = vst [vmem:[%s284 + $0x60] sm:$0xff] %v2106
          %2171 = vst [vmem:[%s284 + $0x68] sm:$0xff] %v2107
          %2172 = vst [vmem:[%s284 + $0x70] sm:$0xff] %v2108
          %2173 = vst [vmem:[%s284 + $0x78] sm:$0xff] %v2109
          %2174 = vst [vmem:[%s284 + $0x80] sm:$0xff] %v2110
          %2175 = vst [vmem:[%s284 + $0x88] sm:$0xff] %v2111
          %2176 = vst [vmem:[%s284 + $0x90] sm:$0xff] %v2112
          %2177 = vst [vmem:[%s284 + $0x98] sm:$0xff] %v2113
          %2178 = vst [vmem:[%s284 + $0xa0] sm:$0xff] %v2114
          %2179 = vst [vmem:[%s284 + $0xa8] sm:$0xff] %v2115
          %2180 = vst [vmem:[%s284 + $0xb0] sm:$0xff] %v2116
          %2181 = vst [vmem:[%s284 + $0xb8] sm:$0xff] %v2117
          %2182 = vst [vmem:[%s284 + $0xc0] sm:$0xff] %v2118
          %2183 = vst [vmem:[%s284 + $0xc8] sm:$0xff] %v2119
          %2184 = vst [vmem:[%s284 + $0xd0] sm:$0xff] %v2120
          %2185 = vst [vmem:[%s284 + $0xd8] sm:$0xff] %v2121
          %2186 = vst [vmem:[%s284 + $0xe0] sm:$0xff] %v2122
          %2187 = vst [vmem:[%s284 + $0xe8] sm:$0xff] %v2123
          %2188 = vst [vmem:[%s284 + $0xf0] sm:$0xff] %v2124
          %2189 = vst [vmem:[%s284 + $0xf8] sm:$0xff] %v2125
          %2190 = vst [vmem:[%s284 + $0x100] sm:$0xff] %v2126
          %2191 = vst [vmem:[%s284 + $0x108] sm:$0xff] %v2127
          %2192 = vst [vmem:[%s284 + $0x110] sm:$0xff] %v2128
          %2193 = vst [vmem:[%s284 + $0x118] sm:$0xff] %v2129
          %2194 = vst [vmem:[%s284 + $0x120] sm:$0xff] %v2130
          %2195 = vst [vmem:[%s284 + $0x128] sm:$0xff] %v2131
          %2196 = vst [vmem:[%s284 + $0x130] sm:$0xff] %v2132
          %2197 = vst [vmem:[%s284 + $0x138] sm:$0xff] %v2133
          %2198 = vst [vmem:[%s284 + $0x140] sm:$0xff] %v2134
          %2199 = vst [vmem:[%s284 + $0x148] sm:$0xff] %v2135
          %2200 = vst [vmem:[%s284 + $0x150] sm:$0xff] %v2136
          %2201 = vst [vmem:[%s284 + $0x158] sm:$0xff] %v2137
          %2202 = vst [vmem:[%s284 + $0x160] sm:$0xff] %v2138
          %2203 = vst [vmem:[%s284 + $0x168] sm:$0xff] %v2139
          %2204 = vst [vmem:[%s284 + $0x170] sm:$0xff] %v2140
          %2205 = vst [vmem:[%s284 + $0x178] sm:$0xff] %v2141
          %2206 = vst [vmem:[%s284 + $0x180] sm:$0xff] %v2142
          %2207 = vst [vmem:[%s284 + $0x188] sm:$0xff] %v2143
          %2208 = vst [vmem:[%s284 + $0x190] sm:$0xff] %v2144
          %2209 = vst [vmem:[%s284 + $0x198] sm:$0xff] %v2145
          %2210 = vst [vmem:[%s284 + $0x1a0] sm:$0xff] %v2146
          %2211 = vst [vmem:[%s284 + $0x1a8] sm:$0xff] %v2147
          %2212 = vst [vmem:[%s284 + $0x1b0] sm:$0xff] %v2148
          %2213 = vst [vmem:[%s284 + $0x1b8] sm:$0xff] %v2149
          %2214 = vst [vmem:[%s284 + $0x1c0] sm:$0xff] %v2150
          %2215 = vst [vmem:[%s284 + $0x1c8] sm:$0xff] %v2151
          %2216 = vst [vmem:[%s284 + $0x1d0] sm:$0xff] %v2152
          %2217 = vst [vmem:[%s284 + $0x1d8] sm:$0xff] %v2153
          %2218 = vst [vmem:[%s284 + $0x1e0] sm:$0xff] %v2154
          %2219 = vst [vmem:[%s284 + $0x1e8] sm:$0xff] %v2155
          %2220 = vst [vmem:[%s284 + $0x1f0] sm:$0xff] %v2156
          %2221 = vst [vmem:[%s284 + $0x1f8] sm:$0xff] %v2157
        $region52: #{tpu_custom_call.1} parent=31 // pred_fallthru
          _
        %s2222 = sand.u32 %s134, 1
        %s2223 = scalar_lea.sflag [#allocation6], %s2222
        %s2224 = sand.u32 %s134, 1
        %s2225 = smul.addr %s2224, 512
        %s2226 = scalar_lea.vmem [#allocation10], %s2225
        // Predicated region
        $region53: #{tpu_custom_call.1} parent=31 // pred_check
          %p2227 = pneg %p144
        $region54: #{tpu_custom_call.1} parent=31 // pred_check_branch
          %2229 = sbr.rel (%p2227) target = $region56
        $region55: #{tpu_custom_call.1} parent=31 // pred_region
          %s2230 = smul.u32 32, %s26
          %s2231 = smul.u32 2, %s27
          %s2233 = ssub.s32 8192, 8192
          %2234 = vsyncadd %s2223, %s2233
          %s2235 = smul.addr %s2230, 6
          %s2236 = sadd.s32 %s2231, %s2235
          %s2237 = smul.addr %s2236, 128
          %s2238 = scalar_lea.hbm %s3, %s2237
          %s2239 = sshll.u32 %s2226, 4
          %s2240 = int_to_ptr.vmem [resolvable:$true] %s2239
          %2245 = dma.vmem_to_hbm [thread:$0]  %s2240, 8192, %s2238, %s2223, 256, 768, 16
        $region56: #{tpu_custom_call.1} parent=31 // pred_fallthru
          _
      $region32: #{tpu_custom_call.1} parent=5 // pred_fallthru
        _
      %p2246 = scmp.le.s32.totalorder 2, %s16
      // Predicated region
      $region57: #{tpu_custom_call.1} parent=5 // pred_check
        %p2247 = pneg %p2246
      $region58: #{tpu_custom_call.1} parent=5 // pred_check_branch
        %2249 = sbr.rel (%p2247) target = $region60
      $region59: #{tpu_custom_call.1} parent=5 // pred_region
        %s2250 = ssub.s32 %s16, 2
        // Predicated region
        $region61: #{tpu_custom_call.1} parent=59 // pred_check
          %p2251 = pneg %p150
        $region62: #{tpu_custom_call.1} parent=59 // pred_check_branch
          %2253 = sbr.rel (%p2251) target = $region64
        $region63: #{tpu_custom_call.1} parent=59 // pred_region
          %s2254 = sand.u32 %s135, 1
          %s2255 = scalar_lea.sflag [#allocation6], %s2254
          %s2256 = sand.u32 %s135, 1
          %s2257 = smul.addr %s2256, 512
          %s2258 = scalar_lea.vmem [#allocation10], %s2257
          %2259 = dma.done %s2255, 8192
        $region64: #{tpu_custom_call.1} parent=59 // pred_fallthru
          _
      $region60: #{tpu_custom_call.1} parent=5 // pred_fallthru
        _
    $region6: #{tpu_custom_call.1} parent=1 // loop_footer
      %s20 = sadd.s32 1, %s16
    $region7: #{tpu_custom_call.1} parent=1 // loop_footer_branch
      %15 = sbr.rel target = $region3
    $region8: #{tpu_custom_call.1} parent=1 // loop_exit
      _
    %2260 = vsyncpa [#allocation5], 1
    %s2261 = scalar_lea.sflag [#allocation5], 1
    %2262 = vsyncpa %s2261, 1
    %2263 = vsyncpa [#allocation8], 1
    %s2264 = scalar_lea.sflag [#allocation8], 1
    %2265 = vsyncpa %s2264, 1
    %2266 = vsyncpa [#allocation6], 1
    %s2267 = scalar_lea.sflag [#allocation6], 1
    %2268 = vsyncpa %s2267, 1

</llo_original>
